<compile_context>
chip_gen: v7x
topology: tpu7x:2x2x1
jax: 0.10.0
libtpu: 0.0.40
codegen_flags: <defaults>
</compile_context>

<pallas_src>
import functools
import math

import jax
import jax.numpy as jnp
import numpy as np
from jax import lax
from jax.experimental import pallas as pl
from jax.experimental.pallas import tpu as pltpu

LN_EPS = 1e-12


# ---------------------------------------------------------------------------
# Compiler params: per-generation VMEM budget + parallel grid semantics.
# ---------------------------------------------------------------------------
@functools.lru_cache(maxsize=None)
def _vmem_limit_bytes():
    try:
        cap = getattr(pltpu.get_tpu_info(), "vmem_capacity_bytes", None)
        if cap:
            # ~85% of physical: ~109 MiB on v5e/v6e (128 MiB), ~54 MiB on v7x (64 MiB).
            return min(int(cap * 0.85), 110 * 1024 * 1024)
    except Exception:
        pass
    return 48 * 1024 * 1024  # conservative fallback, safe on every generation


def _compiler_params(grid_rank):
    return pltpu.CompilerParams(
        dimension_semantics=("parallel",) * grid_rank,
        vmem_limit_bytes=_vmem_limit_bytes(),
    )


# ---------------------------------------------------------------------------
# In-kernel math helpers (trace into the Pallas kernels).
# ---------------------------------------------------------------------------
def _layernorm(x, w, b, eps=LN_EPS):
    u = jnp.mean(x, axis=-1, keepdims=True)
    s = jnp.mean((x - u) ** 2, axis=-1, keepdims=True)
    return (x - u) / jnp.sqrt(s + eps) * w + b


def _gelu_tanh(x):
    c = 0.7978845608028654  # sqrt(2/pi)
    return 0.5 * x * (1.0 + jnp.tanh(c * (x + 0.044715 * x * x * x)))


def _gelu_erf(x):  # exact gelu (torch reference), used only by the pure-JAX ref
    return x * 0.5 * (1.0 + jax.lax.erf(x / math.sqrt(2.0)))


# ---------------------------------------------------------------------------
# Kernel 1: fused per-(batch, head) attention
#   QKV projection (per-head weight slices) + softmax(Q K^T * scale + mask) V.
#   Working set per grid step: [S,H] activations + [S,S] scores  (fits VMEM easily).
# ---------------------------------------------------------------------------
def attention_kernel(h_ref, w_ref, b_ref, mask_ref, ctx_ref, *maybe_probs_ref, scale):
    x = h_ref[...].astype(jnp.bfloat16)                        # [S, H]

    # per-head projections (f32 accumulate, then bf16 for the score matmul)
    q = jnp.dot(x, w_ref[0], preferred_element_type=jnp.float32) + b_ref[0]   # [S, hd]
    k = jnp.dot(x, w_ref[1], preferred_element_type=jnp.float32) + b_ref[1]
    v = jnp.dot(x, w_ref[2], preferred_element_type=jnp.float32) + b_ref[2]

    q = (q * scale).astype(jnp.bfloat16)     # fold 1/sqrt(hd) into q (S*hd, not S*S)
    k = k.astype(jnp.bfloat16)

    scores = jnp.einsum("qd,kd->qk", q, k,
                        preferred_element_type=jnp.float32)    # [S, S] f32
    scores = scores + mask_ref[...]                            # additive mask [1,S]

    m = jnp.max(scores, axis=-1, keepdims=True)
    e = jnp.exp(scores - m)
    l = jnp.sum(e, axis=-1, keepdims=True)

    if maybe_probs_ref:
        probs_ref, = maybe_probs_ref
        p = e / l                                              # exact: emitted rows sum to 1
        probs_ref[...] = p.astype(probs_ref.dtype)
    else:
        p = e * pl.reciprocal(l, approx=True)                  # approx recip, context only

    ctx = jnp.dot(p.astype(jnp.bfloat16), v.astype(jnp.bfloat16),
                  preferred_element_type=jnp.float32)          # [S, hd]
    ctx_ref[...] = ctx.astype(ctx_ref.dtype)


# ---------------------------------------------------------------------------
# Kernel 2: attention output projection + LN1 + FFN (fori_loop chunked) + LN2.
#   Consumes ctx in head-major layout (no merge transpose): attn = sum_h ctx_h @ Wo_h.
# ---------------------------------------------------------------------------
def output_ffn_kernel(ctx_ref, h_ref, wo_ref, bo_ref, ln1w_ref, ln1b_ref,
                      wi_ref, bi_ref, wo2_ref, bo2_ref, ln2w_ref, ln2b_ref,
                      out_ref):
    num_heads = ctx_ref.shape[0]
    n_chunks = wi_ref.shape[0]
    t_s, hidden = h_ref.shape
    h = h_ref[...]                                             # [tS, H] f32 residual

    # attention output projection: sum over heads of ctx_h @ Wo_h  (f32 accumulate)
    def head_body(hh, acc):
        return acc + jnp.dot(ctx_ref[hh], wo_ref[hh],
                             preferred_element_type=jnp.float32)

    attn = lax.fori_loop(0, num_heads, head_body,
                         jnp.zeros((t_s, hidden), jnp.float32) + bo_ref[...])
    h1 = _layernorm(attn + h, ln1w_ref[...], ln1b_ref[...])    # [tS, H] f32
    h1_bf = h1.astype(jnp.bfloat16)

    # FFN chunked over the intermediate dim; one [tS, chunk] intermediate live at a time.
    def ffn_body(c, acc):
        inter = jnp.dot(h1_bf, wi_ref[c],
                        preferred_element_type=jnp.float32) + bi_ref[c]
        inter = _gelu_tanh(inter)
        return acc + jnp.dot(inter.astype(jnp.bfloat16), wo2_ref[c],
                             preferred_element_type=jnp.float32)

    ffn = lax.fori_loop(0, n_chunks, ffn_body,
                        jnp.zeros((t_s, hidden), jnp.float32) + bo2_ref[...])
    out_ref[...] = _layernorm(ffn + h1, ln2w_ref[...], ln2b_ref[...])


# ---------------------------------------------------------------------------
# One-time parameter preparation (hoisted out of the per-call forward):
# QKV concat, bf16 casts and head-/chunk-major reshapes are paid exactly once.
# ---------------------------------------------------------------------------
def prepare_params(params, num_heads):
    H = params["wq"].shape[0]
    I = params["wi"].shape[1]
    hd = H // num_heads
    bf16 = jnp.bfloat16

    qkv_w = jnp.stack([params["wq"], params["wk"], params["wv"]])            # [3,H,H]
    qkv_w = qkv_w.reshape(3, H, num_heads, hd).transpose(0, 2, 1, 3)         # [3,nh,H,hd]
    qkv_b = jnp.stack([params["bq"], params["bk"], params["bv"]])            # [3,1,H]
    qkv_b = qkv_b.reshape(3, 1, num_heads, hd).transpose(0, 2, 1, 3)         # [3,nh,1,hd]

    chunk = I
    if I > 512:
        for cand in (512, 384, 256, 128):
            if I % cand == 0:
                chunk = cand
                break
    n_chunks = I // chunk

    return {
        "qkv_w": qkv_w.astype(bf16),
        "qkv_b": qkv_b.astype(jnp.float32),
        "wo_h": params["wo"].reshape(num_heads, hd, H).astype(bf16),         # [nh,hd,H]
        "bo": params["bo"], "ln1w": params["ln1w"], "ln1b": params["ln1b"],
        "wi_c": params["wi"].reshape(H, n_chunks, chunk).transpose(1, 0, 2).astype(bf16),
        "bi_c": params["bi"].reshape(n_chunks, 1, chunk),
        "wo2_c": params["wo2"].reshape(n_chunks, chunk, H).astype(bf16),
        "bo2": params["bo2"], "ln2w": params["ln2w"], "ln2b": params["ln2b"],
    }


# ---------------------------------------------------------------------------
# BertLayer forward (hot path entirely in Pallas; no inter-kernel transposes).
# ---------------------------------------------------------------------------
def bert_layer_forward(prep, hidden_states, attention_mask, num_heads,
                       return_probs=True, probs_dtype=jnp.float32):
    """hidden_states: [B,S,H] f32; attention_mask: additive mask (0 / -10000),
    broadcastable [B,1,1,S] (per-query [B,1,S,S] masks are NOT supported).
    Returns (layer_output, attention_probs | None)."""
    B, S, H = hidden_states.shape
    hd = H // num_heads
    f32, bf16 = jnp.float32, jnp.bfloat16
    mask3 = attention_mask.astype(f32).reshape(B, 1, S)
    cparams = _compiler_params(2)

    # --- 1) fused per-(batch, head) attention -------------------------------
    ctx_spec = pl.BlockSpec((None, None, S, hd), lambda b, h: (b, h, 0, 0))
    if return_probs:
        out_specs = (ctx_spec,
                     pl.BlockSpec((None, None, S, S), lambda b, h: (b, h, 0, 0)))
        out_shape = (jax.ShapeDtypeStruct((B, num_heads, S, hd), bf16),
                     jax.ShapeDtypeStruct((B, num_heads, S, S), probs_dtype))
    else:
        out_specs = ctx_spec
        out_shape = jax.ShapeDtypeStruct((B, num_heads, S, hd), bf16)

    attn_res = pl.pallas_call(
        functools.partial(attention_kernel, scale=1.0 / math.sqrt(hd)),
        grid=(B, num_heads),
        in_specs=[
            # hidden block index is constant across the head axis -> fetched once per row
            pl.BlockSpec((None, S, H), lambda b, h: (b, 0, 0)),
            pl.BlockSpec((3, None, H, hd), lambda b, h: (0, h, 0, 0)),   # per-head W_{q,k,v}
            pl.BlockSpec((3, None, 1, hd), lambda b, h: (0, h, 0, 0)),   # per-head b_{q,k,v}
            pl.BlockSpec((None, 1, S), lambda b, h: (b, 0, 0)),          # additive mask
        ],
        out_specs=out_specs,
        out_shape=out_shape,
        compiler_params=cparams,
    )(hidden_states, prep["qkv_w"], prep["qkv_b"], mask3)

    if return_probs:
        ctx, probs = attn_res
    else:
        ctx, probs = attn_res, None

    # --- 2) output projection + LN1 + FFN + LN2, tiled over (batch, seq tile) ---
    ts = S if (S <= 256 or S % 256 != 0) else 256
    n_chunks, _, chunk = prep["wi_c"].shape

    def const_spec(shape):
        return pl.BlockSpec(shape, lambda b, s, _n=len(shape): (0,) * _n)

    layer_out = pl.pallas_call(
        output_ffn_kernel,
        grid=(B, S // ts),
        in_specs=[
            pl.BlockSpec((None, num_heads, ts, hd), lambda b, s: (b, 0, s, 0)),  # ctx
            pl.BlockSpec((None, ts, H), lambda b, s: (b, s, 0)),                 # residual
            const_spec((num_heads, hd, H)),          # Wo (head-major)
            const_spec((1, H)),                      # bo
            const_spec((1, H)),                      # ln1w
            const_spec((1, H)),                      # ln1b
            const_spec((n_chunks, H, chunk)),        # Wi (chunk-major)
            const_spec((n_chunks, 1, chunk)),        # bi
            const_spec((n_chunks, chunk, H)),        # Wo2 (chunk-major)
            const_spec((1, H)),                      # bo2
            const_spec((1, H)),                      # ln2w
            const_spec((1, H)),                      # ln2b
        ],
        out_specs=pl.BlockSpec((None, ts, H), lambda b, s: (b, s, 0)),
        out_shape=jax.ShapeDtypeStruct((B, S, H), f32),
        compiler_params=cparams,
    )(ctx, hidden_states, prep["wo_h"], prep["bo"], prep["ln1w"], prep["ln1b"],
      prep["wi_c"], prep["bi_c"], prep["wo2_c"], prep["bo2"],
      prep["ln2w"], prep["ln2b"])

    return layer_out, probs


# ---------------------------------------------------------------------------
# Pure-JAX f32 reference (mirrors the torch module, exact erf GELU).
# ---------------------------------------------------------------------------
def ref_bert_layer(params, hidden_states, attention_mask, num_heads):
    HIGH = jax.lax.Precision.HIGHEST
    B, S, H = hidden_states.shape
    hd = H // num_heads
    x = hidden_states

    def dense(t, w, b):
        return jnp.dot(t, w, precision=HIGH) + b

    q, k, v = (dense(x, params[n], params[m])
               for n, m in (("wq", "bq"), ("wk", "bk"), ("wv", "bv")))

    def split(t):
        return t.reshape(B, S, num_heads, hd).transpose(0, 2, 1, 3)

    q, k, v = split(q), split(k), split(v)
    scores = jnp.einsum("bhqd,bhkd->bhqk", q, k, precision=HIGH) / math.sqrt(hd)
    scores = scores + attention_mask.reshape(B, 1, 1, S)
    probs = jax.nn.softmax(scores, axis=-1)
    ctx = jnp.einsum("bhqk,bhkd->bhqd", probs, v, precision=HIGH)
    ctx = ctx.transpose(0, 2, 1, 3).reshape(B, S, H)

    h1 = _layernorm(dense(ctx, params["wo"], params["bo"]) + x,
                    params["ln1w"], params["ln1b"])
    inter = _gelu_erf(dense(h1, params["wi"], params["bi"]))
    out = _layernorm(dense(inter, params["wo2"], params["bo2"]) + h1,
                     params["ln2w"], params["ln2b"])
    return out, probs


# ---------------------------------------------------------------------------
# Deterministic synthetic parameters (weights stored [in, out]; bias/LN as [1, D]).
# ---------------------------------------------------------------------------
def init_params(key, hidden, intermediate):
    ks = jax.random.split(key, 16)

    def w(k, fi, fo):
        return jax.random.normal(k, (fi, fo), jnp.float32) * 0.02

    def b(k, fo):
        return jax.random.normal(k, (1, fo), jnp.float32) * 0.02

    return {
        "wq": w(ks[0], hidden, hidden), "bq": b(ks[1], hidden),
        "wk": w(ks[2], hidden, hidden), "bk": b(ks[3], hidden),
        "wv": w(ks[4], hidden, hidden), "bv": b(ks[5], hidden),
        "wo": w(ks[6], hidden, hidden), "bo": b(ks[7], hidden),
        "ln1w": 1.0 + 0.1 * jax.random.normal(ks[8], (1, hidden), jnp.float32),
        "ln1b": 0.1 * jax.random.normal(ks[9], (1, hidden), jnp.float32),
        "wi": w(ks[10], hidden, intermediate), "bi": b(ks[11], intermediate),
        "wo2": w(ks[12], intermediate, hidden), "bo2": b(ks[13], hidden),
        "ln2w": 1.0 + 0.1 * jax.random.normal(ks[14], (1, hidden), jnp.float32),
        "ln2b": 0.1 * jax.random.normal(ks[15], (1, hidden), jnp.float32),
    }


# ---------------------------------------------------------------------------
if __name__ == "__main__":
    # Small config: batch=2, seq=8, hidden=32, heads=4, intermediate=64
    B, S, H = 2, 8, 32
    NUM_HEADS, INTER = 4, 64

    root = jax.random.PRNGKey(0)
    k_in, k_p = jax.random.split(root)

    hidden_states = jax.random.normal(k_in, (B, S, H), jnp.float32)
    keep = jnp.ones((B, S), jnp.float32).at[1, -2:].set(0.0)        # pad 2 tokens of row 1
    attention_mask = ((1.0 - keep) * -10000.0)[:, None, None, :]    # additive [B,1,1,S]

    params = init_params(k_p, H, INTER)
    prep = prepare_params(params, NUM_HEADS)                        # one-time prep (hoisted)

    fwd = jax.jit(bert_layer_forward,
                  static_argnames=("num_heads", "return_probs", "probs_dtype"))

    out, probs = fwd(prep, hidden_states, attention_mask, num_heads=NUM_HEADS)
    jax.block_until_ready((out, probs))

    # Correctness check against the pure-JAX f32 reference.
    ref_out, ref_probs = ref_bert_layer(params, hidden_states, attention_mask, NUM_HEADS)
    np.testing.assert_allclose(np.asarray(out), np.asarray(ref_out),
                               rtol=1e-2, atol=1e-2)
    np.testing.assert_allclose(np.asarray(probs), np.asarray(ref_probs),
                               rtol=1e-2, atol=1e-2)

    # Probs output is optional (it is the dominant HBM write at real sizes).
    out2, probs2 = fwd(prep, hidden_states, attention_mask,
                       num_heads=NUM_HEADS, return_probs=False)
    jax.block_until_ready(out2)
    assert probs2 is None
    np.testing.assert_allclose(np.asarray(out2), np.asarray(ref_out),
                               rtol=1e-2, atol=1e-2)

    print("KERNEL_OK")
</pallas_src>

<mosaic_0001>
module attributes {stable_mosaic.version = 11 : i64} {
  func.func @attention_kernel(%arg0: i32, %arg1: i32, %arg2: memref<1x8x32xf32, #tpu.memory_space<vmem>>, %arg3: memref<3x1x32x8xbf16, #tpu.memory_space<vmem>>, %arg4: memref<3x1x1x8xf32, #tpu.memory_space<vmem>>, %arg5: memref<1x1x8xf32, #tpu.memory_space<vmem>>, %arg6: memref<1x1x8x8xbf16, #tpu.memory_space<vmem>>, %arg7: memref<1x1x8x8xf32, #tpu.memory_space<vmem>>) attributes {dimension_semantics = [#tpu.dimension_semantics<parallel>, #tpu.dimension_semantics<parallel>], iteration_bounds = array<i64: 2, 4>, scalar_prefetch = 0 : i64, scratch_operands = 0 : i64, tpu.core_type = #tpu.core_type<tc>, window_params = [{transform_indices = @transform_0, window_bounds = array<i64: 1, 8, 32>}, {transform_indices = @transform_1, window_bounds = array<i64: 3, 1, 32, 8>}, {transform_indices = @transform_2, window_bounds = array<i64: 3, 1, 1, 8>}, {transform_indices = @transform_3, window_bounds = array<i64: 1, 1, 8>}, {transform_indices = @transform_4, window_bounds = array<i64: 1, 1, 8, 8>}, {transform_indices = @transform_5, window_bounds = array<i64: 1, 1, 8, 8>}]} {
    %c0 = arith.constant 0 : index
    %c0_0 = arith.constant 0 : index
    %c0_1 = arith.constant 0 : index
    %0 = vector.load %arg2[%c0, %c0_0, %c0_1] : memref<1x8x32xf32, #tpu.memory_space<vmem>>, vector<1x8x32xf32>
    %1 = vector.shape_cast %0 : vector<1x8x32xf32> to vector<8x32xf32>
    %2 = arith.truncf %1 : vector<8x32xf32> to vector<8x32xbf16>
    %c0_2 = arith.constant 0 : index
    %c0_3 = arith.constant 0 : index
    %c0_4 = arith.constant 0 : index
    %c0_5 = arith.constant 0 : index
    %3 = vector.load %arg3[%c0_2, %c0_3, %c0_4, %c0_5] : memref<3x1x32x8xbf16, #tpu.memory_space<vmem>>, vector<1x1x32x8xbf16>
    %4 = vector.shape_cast %3 : vector<1x1x32x8xbf16> to vector<32x8xbf16>
    %cst = arith.constant dense<0.000000e+00> : vector<8x8xf32>
    %5 = tpu.matmul %2, %4, %cst {dimension_numbers = #tpu.dot_dimension_numbers<[1], [0], [0], [1], [0, 0, 1, 1], [], []>} : vector<8x32xbf16>, vector<32x8xbf16>, vector<8x8xf32> -> vector<8x8xf32>
    %c0_6 = arith.constant 0 : index
    %c0_7 = arith.constant 0 : index
    %c0_8 = arith.constant 0 : index
    %c0_9 = arith.constant 0 : index
    %6 = vector.load %arg4[%c0_6, %c0_7, %c0_8, %c0_9] : memref<3x1x1x8xf32, #tpu.memory_space<vmem>>, vector<1x1x1x8xf32>
    %7 = vector.shape_cast %6 : vector<1x1x1x8xf32> to vector<1x8xf32>
    %8 = vector.broadcast %7 : vector<1x8xf32> to vector<8x8xf32>
    %9 = arith.addf %5, %8 : vector<8x8xf32>
    %c1 = arith.constant 1 : index
    %c0_10 = arith.constant 0 : index
    %c0_11 = arith.constant 0 : index
    %c0_12 = arith.constant 0 : index
    %10 = vector.load %arg3[%c1, %c0_10, %c0_11, %c0_12] : memref<3x1x32x8xbf16, #tpu.memory_space<vmem>>, vector<1x1x32x8xbf16>
    %11 = vector.shape_cast %10 : vector<1x1x32x8xbf16> to vector<32x8xbf16>
    %cst_13 = arith.constant dense<0.000000e+00> : vector<8x8xf32>
    %12 = tpu.matmul %2, %11, %cst_13 {dimension_numbers = #tpu.dot_dimension_numbers<[1], [0], [0], [1], [0, 0, 1, 1], [], []>} : vector<8x32xbf16>, vector<32x8xbf16>, vector<8x8xf32> -> vector<8x8xf32>
    %c1_14 = arith.constant 1 : index
    %c0_15 = arith.constant 0 : index
    %c0_16 = arith.constant 0 : index
    %c0_17 = arith.constant 0 : index
    %13 = vector.load %arg4[%c1_14, %c0_15, %c0_16, %c0_17] : memref<3x1x1x8xf32, #tpu.memory_space<vmem>>, vector<1x1x1x8xf32>
    %14 = vector.shape_cast %13 : vector<1x1x1x8xf32> to vector<1x8xf32>
    %15 = vector.broadcast %14 : vector<1x8xf32> to vector<8x8xf32>
    %16 = arith.addf %12, %15 : vector<8x8xf32>
    %c2 = arith.constant 2 : index
    %c0_18 = arith.constant 0 : index
    %c0_19 = arith.constant 0 : index
    %c0_20 = arith.constant 0 : index
    %17 = vector.load %arg3[%c2, %c0_18, %c0_19, %c0_20] : memref<3x1x32x8xbf16, #tpu.memory_space<vmem>>, vector<1x1x32x8xbf16>
    %18 = vector.shape_cast %17 : vector<1x1x32x8xbf16> to vector<32x8xbf16>
    %cst_21 = arith.constant dense<0.000000e+00> : vector<8x8xf32>
    %19 = tpu.matmul %2, %18, %cst_21 {dimension_numbers = #tpu.dot_dimension_numbers<[1], [0], [0], [1], [0, 0, 1, 1], [], []>} : vector<8x32xbf16>, vector<32x8xbf16>, vector<8x8xf32> -> vector<8x8xf32>
    %c2_22 = arith.constant 2 : index
    %c0_23 = arith.constant 0 : index
    %c0_24 = arith.constant 0 : index
    %c0_25 = arith.constant 0 : index
    %20 = vector.load %arg4[%c2_22, %c0_23, %c0_24, %c0_25] : memref<3x1x1x8xf32, #tpu.memory_space<vmem>>, vector<1x1x1x8xf32>
    %21 = vector.shape_cast %20 : vector<1x1x1x8xf32> to vector<1x8xf32>
    %22 = vector.broadcast %21 : vector<1x8xf32> to vector<8x8xf32>
    %23 = arith.addf %19, %22 : vector<8x8xf32>
    %cst_26 = arith.constant 0.353553385 : f32
    %24 = vector.broadcast %cst_26 : f32 to vector<8x8xf32>
    %25 = arith.mulf %9, %24 : vector<8x8xf32>
    %26 = arith.truncf %25 : vector<8x8xf32> to vector<8x8xbf16>
    %27 = arith.truncf %16 : vector<8x8xf32> to vector<8x8xbf16>
    "tpu.trace_start"() <{level = 10 : i32, message = "qd,kd->qk"}> : () -> ()
    %cst_27 = arith.constant dense<0.000000e+00> : vector<8x8xf32>
    %28 = tpu.matmul %26, %27, %cst_27 {dimension_numbers = #tpu.dot_dimension_numbers<[1], [1], [0], [0], [0, 0, 1, 0], [], []>} : vector<8x8xbf16>, vector<8x8xbf16>, vector<8x8xf32> -> vector<8x8xf32>
    "tpu.trace_stop"() : () -> ()
    %c0_28 = arith.constant 0 : index
    %c0_29 = arith.constant 0 : index
    %c0_30 = arith.constant 0 : index
    %29 = vector.load %arg5[%c0_28, %c0_29, %c0_30] : memref<1x1x8xf32, #tpu.memory_space<vmem>>, vector<1x1x8xf32>
    %30 = vector.shape_cast %29 : vector<1x1x8xf32> to vector<1x8xf32>
    %31 = vector.broadcast %30 : vector<1x8xf32> to vector<8x8xf32>
    %32 = arith.addf %28, %31 : vector<8x8xf32>
    %cst_31 = arith.constant dense<0xFF800000> : vector<8xf32>
    %33 = vector.multi_reduction <maximumf>, %32, %cst_31 [1] : vector<8x8xf32> to vector<8xf32>
    %34 = vector.shape_cast %33 : vector<8xf32> to vector<8x1xf32>
    %35 = vector.broadcast %34 : vector<8x1xf32> to vector<8x8xf32>
    %36 = arith.subf %32, %35 : vector<8x8xf32>
    %37 = math.exp %36 : vector<8x8xf32>
    %cst_32 = arith.constant dense<0.000000e+00> : vector<8xf32>
    %38 = vector.multi_reduction <add>, %37, %cst_32 [1] : vector<8x8xf32> to vector<8xf32>
    %39 = vector.shape_cast %38 : vector<8xf32> to vector<8x1xf32>
    %40 = vector.broadcast %39 : vector<8x1xf32> to vector<8x8xf32>
    %41 = arith.divf %37, %40 : vector<8x8xf32>
    %c0_33 = arith.constant 0 : index
    %c0_34 = arith.constant 0 : index
    %c0_35 = arith.constant 0 : index
    %c0_36 = arith.constant 0 : index
    %42 = vector.load %arg7[%c0_33, %c0_34, %c0_35, %c0_36] : memref<1x1x8x8xf32, #tpu.memory_space<vmem>>, vector<1x1x8x8xf32>
    %43 = vector.shape_cast %42 : vector<1x1x8x8xf32> to vector<8x8xf32>
    %44 = vector.shape_cast %41 : vector<8x8xf32> to vector<1x1x8x8xf32>
    tpu.vector_store %arg7[%c0_33, %c0_34, %c0_35, %c0_36], %44 {strides = array<i32>} : memref<1x1x8x8xf32, #tpu.memory_space<vmem>>, vector<1x1x8x8xf32>,
    %45 = arith.truncf %41 : vector<8x8xf32> to vector<8x8xbf16>
    %46 = arith.truncf %23 : vector<8x8xf32> to vector<8x8xbf16>
    %cst_37 = arith.constant dense<0.000000e+00> : vector<8x8xf32>
    %47 = tpu.matmul %45, %46, %cst_37 {dimension_numbers = #tpu.dot_dimension_numbers<[1], [0], [0], [1], [0, 0, 1, 1], [], []>} : vector<8x8xbf16>, vector<8x8xbf16>, vector<8x8xf32> -> vector<8x8xf32>
    %48 = arith.truncf %47 : vector<8x8xf32> to vector<8x8xbf16>
    %c0_38 = arith.constant 0 : index
    %c0_39 = arith.constant 0 : index
    %c0_40 = arith.constant 0 : index
    %c0_41 = arith.constant 0 : index
    %49 = vector.load %arg6[%c0_38, %c0_39, %c0_40, %c0_41] : memref<1x1x8x8xbf16, #tpu.memory_space<vmem>>, vector<1x1x8x8xbf16>
    %50 = vector.shape_cast %49 : vector<1x1x8x8xbf16> to vector<8x8xbf16>
    %51 = vector.shape_cast %48 : vector<8x8xbf16> to vector<1x1x8x8xbf16>
    tpu.vector_store %arg6[%c0_38, %c0_39, %c0_40, %c0_41], %51 {strides = array<i32>} : memref<1x1x8x8xbf16, #tpu.memory_space<vmem>>, vector<1x1x8x8xbf16>,
    return
  }
  func.func @transform_0(%arg0: i32, %arg1: i32) -> (i32, i32, i32) {
    %c0_i32 = arith.constant 0 : i32
    %c0_i32_0 = arith.constant 0 : i32
    %c0_i32_1 = arith.constant 0 : i32
    return %arg0, %c0_i32, %c0_i32_0 : i32, i32, i32
  }
  func.func @transform_1(%arg0: i32, %arg1: i32) -> (i32, i32, i32, i32) {
    %c0_i32 = arith.constant 0 : i32
    %c0_i32_0 = arith.constant 0 : i32
    %c0_i32_1 = arith.constant 0 : i32
    %c0_i32_2 = arith.constant 0 : i32
    return %c0_i32, %arg1, %c0_i32_0, %c0_i32_1 : i32, i32, i32, i32
  }
  func.func @transform_2(%arg0: i32, %arg1: i32) -> (i32, i32, i32, i32) {
    %c0_i32 = arith.constant 0 : i32
    %c0_i32_0 = arith.constant 0 : i32
    %c0_i32_1 = arith.constant 0 : i32
    %c0_i32_2 = arith.constant 0 : i32
    return %c0_i32, %arg1, %c0_i32_0, %c0_i32_1 : i32, i32, i32, i32
  }
  func.func @transform_3(%arg0: i32, %arg1: i32) -> (i32, i32, i32) {
    %c0_i32 = arith.constant 0 : i32
    %c0_i32_0 = arith.constant 0 : i32
    %c0_i32_1 = arith.constant 0 : i32
    return %arg0, %c0_i32, %c0_i32_0 : i32, i32, i32
  }
  func.func @transform_4(%arg0: i32, %arg1: i32) -> (i32, i32, i32, i32) {
    %c0_i32 = arith.constant 0 : i32
    %c0_i32_0 = arith.constant 0 : i32
    %c0_i32_1 = arith.constant 0 : i32
    return %arg0, %arg1, %c0_i32, %c0_i32_0 : i32, i32, i32, i32
  }
  func.func @transform_5(%arg0: i32, %arg1: i32) -> (i32, i32, i32, i32) {
    %c0_i32 = arith.constant 0 : i32
    %c0_i32_0 = arith.constant 0 : i32
    %c0_i32_1 = arith.constant 0 : i32
    return %arg0, %arg1, %c0_i32, %c0_i32_0 : i32, i32, i32, i32
  }
}

module attributes {stable_mosaic.version = 11 : i64} {
  func.func @output_ffn_kernel(%arg0: i32, %arg1: i32, %arg2: memref<1x4x8x8xbf16, #tpu.memory_space<vmem>>, %arg3: memref<1x8x32xf32, #tpu.memory_space<vmem>>, %arg4: memref<4x8x32xbf16, #tpu.memory_space<vmem>>, %arg5: memref<1x32xf32, #tpu.memory_space<vmem>>, %arg6: memref<1x32xf32, #tpu.memory_space<vmem>>, %arg7: memref<1x32xf32, #tpu.memory_space<vmem>>, %arg8: memref<1x32x64xbf16, #tpu.memory_space<vmem>>, %arg9: memref<1x1x64xf32, #tpu.memory_space<vmem>>, %arg10: memref<1x64x32xbf16, #tpu.memory_space<vmem>>, %arg11: memref<1x32xf32, #tpu.memory_space<vmem>>, %arg12: memref<1x32xf32, #tpu.memory_space<vmem>>, %arg13: memref<1x32xf32, #tpu.memory_space<vmem>>, %arg14: memref<1x8x32xf32, #tpu.memory_space<vmem>>) attributes {dimension_semantics = [#tpu.dimension_semantics<parallel>, #tpu.dimension_semantics<parallel>], iteration_bounds = array<i64: 2, 1>, scalar_prefetch = 0 : i64, scratch_operands = 0 : i64, tpu.core_type = #tpu.core_type<tc>, window_params = [{transform_indices = @transform_0, window_bounds = array<i64: 1, 4, 8, 8>}, {transform_indices = @transform_1, window_bounds = array<i64: 1, 8, 32>}, {pipeline_mode = #tpu.pipeline_mode<synchronous>, transform_indices = @transform_2, window_bounds = array<i64: 4, 8, 32>}, {pipeline_mode = #tpu.pipeline_mode<synchronous>, transform_indices = @transform_3, window_bounds = array<i64: 1, 32>}, {pipeline_mode = #tpu.pipeline_mode<synchronous>, transform_indices = @transform_4, window_bounds = array<i64: 1, 32>}, {pipeline_mode = #tpu.pipeline_mode<synchronous>, transform_indices = @transform_5, window_bounds = array<i64: 1, 32>}, {pipeline_mode = #tpu.pipeline_mode<synchronous>, transform_indices = @transform_6, window_bounds = array<i64: 1, 32, 64>}, {pipeline_mode = #tpu.pipeline_mode<synchronous>, transform_indices = @transform_7, window_bounds = array<i64: 1, 1, 64>}, {pipeline_mode = #tpu.pipeline_mode<synchronous>, transform_indices = @transform_8, window_bounds = array<i64: 1, 64, 32>}, {pipeline_mode = #tpu.pipeline_mode<synchronous>, transform_indices = @transform_9, window_bounds = array<i64: 1, 32>}, {pipeline_mode = #tpu.pipeline_mode<synchronous>, transform_indices = @transform_10, window_bounds = array<i64: 1, 32>}, {pipeline_mode = #tpu.pipeline_mode<synchronous>, transform_indices = @transform_11, window_bounds = array<i64: 1, 32>}, {transform_indices = @transform_12, window_bounds = array<i64: 1, 8, 32>}]} {
    %c0 = arith.constant 0 : index
    %c0_0 = arith.constant 0 : index
    %c0_1 = arith.constant 0 : index
    %0 = vector.load %arg3[%c0, %c0_0, %c0_1] : memref<1x8x32xf32, #tpu.memory_space<vmem>>, vector<1x8x32xf32>
    %1 = vector.shape_cast %0 : vector<1x8x32xf32> to vector<8x32xf32>
    %cst = arith.constant 0.000000e+00 : f32
    %2 = vector.broadcast %cst : f32 to vector<8x32xf32>
    %c0_2 = arith.constant 0 : index
    %c0_3 = arith.constant 0 : index
    %3 = vector.load %arg5[%c0_2, %c0_3] : memref<1x32xf32, #tpu.memory_space<vmem>>, vector<1x32xf32>
    %4 = vector.broadcast %3 : vector<1x32xf32> to vector<8x32xf32>
    %5 = arith.addf %2, %4 : vector<8x32xf32>
    %c0_i32 = arith.constant 0 : i32
    %c4_i32 = arith.constant 4 : i32
    %6 = arith.addi %c0_i32, %c4_i32 : i32
    %c1_i32 = arith.constant 1 : i32
    %7 = scf.for %arg15 = %c0_i32 to %6 step %c1_i32 iter_args(%arg16 = %5) -> (vector<8x32xf32>)  : i32 {
      %c0_43 = arith.constant 0 : index
      %94 = arith.index_cast %arg15 : i32 to index
      %c0_44 = arith.constant 0 : index
      %c0_45 = arith.constant 0 : index
      %95 = vector.load %arg2[%c0_43, %94, %c0_44, %c0_45] : memref<1x4x8x8xbf16, #tpu.memory_space<vmem>>, vector<1x1x8x8xbf16>
      %96 = vector.shape_cast %95 : vector<1x1x8x8xbf16> to vector<8x8xbf16>
      %97 = arith.index_cast %arg15 : i32 to index
      %c0_46 = arith.constant 0 : index
      %c0_47 = arith.constant 0 : index
      %98 = vector.load %arg4[%97, %c0_46, %c0_47] : memref<4x8x32xbf16, #tpu.memory_space<vmem>>, vector<1x8x32xbf16>
      %99 = vector.shape_cast %98 : vector<1x8x32xbf16> to vector<8x32xbf16>
      %cst_48 = arith.constant dense<0.000000e+00> : vector<8x32xf32>
      %100 = tpu.matmul %96, %99, %cst_48 {dimension_numbers = #tpu.dot_dimension_numbers<[1], [0], [0], [1], [0, 0, 1, 1], [], []>} : vector<8x8xbf16>, vector<8x32xbf16>, vector<8x32xf32> -> vector<8x32xf32>
      %101 = arith.addf %arg16, %100 : vector<8x32xf32>
      scf.yield %101 : vector<8x32xf32>
    }
    %c4_i32_4 = arith.constant 4 : i32
    %8 = arith.addf %7, %1 : vector<8x32xf32>
    %c0_5 = arith.constant 0 : index
    %c0_6 = arith.constant 0 : index
    %9 = vector.load %arg6[%c0_5, %c0_6] : memref<1x32xf32, #tpu.memory_space<vmem>>, vector<1x32xf32>
    %c0_7 = arith.constant 0 : index
    %c0_8 = arith.constant 0 : index
    %10 = vector.load %arg7[%c0_7, %c0_8] : memref<1x32xf32, #tpu.memory_space<vmem>>, vector<1x32xf32>
    %cst_9 = arith.constant dense<0.000000e+00> : vector<8xf32>
    %11 = vector.multi_reduction <add>, %8, %cst_9 [1] : vector<8x32xf32> to vector<8xf32>
    %12 = vector.shape_cast %11 : vector<8xf32> to vector<8x1xf32>
    %cst_10 = arith.constant 3.200000e+01 : f32
    %13 = vector.broadcast %cst_10 : f32 to vector<8x1xf32>
    %14 = arith.divf %12, %13 : vector<8x1xf32>
    %15 = vector.broadcast %14 : vector<8x1xf32> to vector<8x32xf32>
    %16 = arith.subf %8, %15 : vector<8x32xf32>
    %17 = arith.mulf %16, %16 : vector<8x32xf32>
    %cst_11 = arith.constant dense<0.000000e+00> : vector<8xf32>
    %18 = vector.multi_reduction <add>, %17, %cst_11 [1] : vector<8x32xf32> to vector<8xf32>
    %19 = vector.shape_cast %18 : vector<8xf32> to vector<8x1xf32>
    %cst_12 = arith.constant 3.200000e+01 : f32
    %20 = vector.broadcast %cst_12 : f32 to vector<8x1xf32>
    %21 = arith.divf %19, %20 : vector<8x1xf32>
    %22 = vector.broadcast %14 : vector<8x1xf32> to vector<8x32xf32>
    %23 = arith.subf %8, %22 : vector<8x32xf32>
    %cst_13 = arith.constant 9.99999996E-13 : f32
    %24 = vector.broadcast %cst_13 : f32 to vector<8x1xf32>
    %25 = arith.addf %21, %24 : vector<8x1xf32>
    %26 = math.sqrt %25 : vector<8x1xf32>
    %27 = vector.broadcast %26 : vector<8x1xf32> to vector<8x32xf32>
    %28 = arith.divf %23, %27 : vector<8x32xf32>
    %29 = vector.broadcast %9 : vector<1x32xf32> to vector<8x32xf32>
    %30 = arith.mulf %28, %29 : vector<8x32xf32>
    %31 = vector.broadcast %10 : vector<1x32xf32> to vector<8x32xf32>
    %32 = arith.addf %30, %31 : vector<8x32xf32>
    %33 = arith.truncf %32 : vector<8x32xf32> to vector<8x32xbf16>
    %cst_14 = arith.constant 0.000000e+00 : f32
    %34 = vector.broadcast %cst_14 : f32 to vector<8x32xf32>
    %c0_15 = arith.constant 0 : index
    %c0_16 = arith.constant 0 : index
    %35 = vector.load %arg11[%c0_15, %c0_16] : memref<1x32xf32, #tpu.memory_space<vmem>>, vector<1x32xf32>
    %36 = vector.broadcast %35 : vector<1x32xf32> to vector<8x32xf32>
    %37 = arith.addf %34, %36 : vector<8x32xf32>
    %c0_i32_17 = arith.constant 0 : i32
    %38 = arith.index_cast %c0_i32_17 : i32 to index
    %c0_18 = arith.constant 0 : index
    %c0_19 = arith.constant 0 : index
    %39 = vector.load %arg8[%38, %c0_18, %c0_19] : memref<1x32x64xbf16, #tpu.memory_space<vmem>>, vector<1x32x64xbf16>
    %40 = vector.shape_cast %39 : vector<1x32x64xbf16> to vector<32x64xbf16>
    %cst_20 = arith.constant dense<0.000000e+00> : vector<8x64xf32>
    %41 = tpu.matmul %33, %40, %cst_20 {dimension_numbers = #tpu.dot_dimension_numbers<[1], [0], [0], [1], [0, 0, 1, 1], [], []>} : vector<8x32xbf16>, vector<32x64xbf16>, vector<8x64xf32> -> vector<8x64xf32>
    %42 = arith.index_cast %c0_i32_17 : i32 to index
    %c0_21 = arith.constant 0 : index
    %c0_22 = arith.constant 0 : index
    %43 = vector.load %arg9[%42, %c0_21, %c0_22] : memref<1x1x64xf32, #tpu.memory_space<vmem>>, vector<1x1x64xf32>
    %44 = vector.shape_cast %43 : vector<1x1x64xf32> to vector<1x64xf32>
    %45 = vector.broadcast %44 : vector<1x64xf32> to vector<8x64xf32>
    %46 = arith.addf %41, %45 : vector<8x64xf32>
    %cst_23 = arith.constant 5.000000e-01 : f32
    %47 = vector.broadcast %cst_23 : f32 to vector<8x64xf32>
    %48 = arith.mulf %47, %46 : vector<8x64xf32>
    %cst_24 = arith.constant 4.471500e-02 : f32
    %49 = vector.broadcast %cst_24 : f32 to vector<8x64xf32>
    %50 = arith.mulf %49, %46 : vector<8x64xf32>
    %51 = arith.mulf %50, %46 : vector<8x64xf32>
    %52 = arith.mulf %51, %46 : vector<8x64xf32>
    %53 = arith.addf %46, %52 : vector<8x64xf32>
    %cst_25 = arith.constant 0.797884583 : f32
    %54 = vector.broadcast %cst_25 : f32 to vector<8x64xf32>
    %55 = arith.mulf %54, %53 : vector<8x64xf32>
    %56 = math.tanh %55 : vector<8x64xf32>
    %cst_26 = arith.constant 1.000000e+00 : f32
    %57 = vector.broadcast %cst_26 : f32 to vector<8x64xf32>
    %58 = arith.addf %57, %56 : vector<8x64xf32>
    %59 = arith.mulf %48, %58 : vector<8x64xf32>
    %60 = arith.truncf %59 : vector<8x64xf32> to vector<8x64xbf16>
    %61 = arith.index_cast %c0_i32_17 : i32 to index
    %c0_27 = arith.constant 0 : index
    %c0_28 = arith.constant 0 : index
    %62 = vector.load %arg10[%61, %c0_27, %c0_28] : memref<1x64x32xbf16, #tpu.memory_space<vmem>>, vector<1x64x32xbf16>
    %63 = vector.shape_cast %62 : vector<1x64x32xbf16> to vector<64x32xbf16>
    %cst_29 = arith.constant dense<0.000000e+00> : vector<8x32xf32>
    %64 = tpu.matmul %60, %63, %cst_29 {dimension_numbers = #tpu.dot_dimension_numbers<[1], [0], [0], [1], [0, 0, 1, 1], [], []>} : vector<8x64xbf16>, vector<64x32xbf16>, vector<8x32xf32> -> vector<8x32xf32>
    %65 = arith.addf %37, %64 : vector<8x32xf32>
    %c1_i32_30 = arith.constant 1 : i32
    %66 = arith.addf %65, %32 : vector<8x32xf32>
    %c0_31 = arith.constant 0 : index
    %c0_32 = arith.constant 0 : index
    %67 = vector.load %arg12[%c0_31, %c0_32] : memref<1x32xf32, #tpu.memory_space<vmem>>, vector<1x32xf32>
    %c0_33 = arith.constant 0 : index
    %c0_34 = arith.constant 0 : index
    %68 = vector.load %arg13[%c0_33, %c0_34] : memref<1x32xf32, #tpu.memory_space<vmem>>, vector<1x32xf32>
    %cst_35 = arith.constant dense<0.000000e+00> : vector<8xf32>
    %69 = vector.multi_reduction <add>, %66, %cst_35 [1] : vector<8x32xf32> to vector<8xf32>
    %70 = vector.shape_cast %69 : vector<8xf32> to vector<8x1xf32>
    %cst_36 = arith.constant 3.200000e+01 : f32
    %71 = vector.broadcast %cst_36 : f32 to vector<8x1xf32>
    %72 = arith.divf %70, %71 : vector<8x1xf32>
    %73 = vector.broadcast %72 : vector<8x1xf32> to vector<8x32xf32>
    %74 = arith.subf %66, %73 : vector<8x32xf32>
    %75 = arith.mulf %74, %74 : vector<8x32xf32>
    %cst_37 = arith.constant dense<0.000000e+00> : vector<8xf32>
    %76 = vector.multi_reduction <add>, %75, %cst_37 [1] : vector<8x32xf32> to vector<8xf32>
    %77 = vector.shape_cast %76 : vector<8xf32> to vector<8x1xf32>
    %cst_38 = arith.constant 3.200000e+01 : f32
    %78 = vector.broadcast %cst_38 : f32 to vector<8x1xf32>
    %79 = arith.divf %77, %78 : vector<8x1xf32>
    %80 = vector.broadcast %72 : vector<8x1xf32> to vector<8x32xf32>
    %81 = arith.subf %66, %80 : vector<8x32xf32>
    %cst_39 = arith.constant 9.99999996E-13 : f32
    %82 = vector.broadcast %cst_39 : f32 to vector<8x1xf32>
    %83 = arith.addf %79, %82 : vector<8x1xf32>
    %84 = math.sqrt %83 : vector<8x1xf32>
    %85 = vector.broadcast %84 : vector<8x1xf32> to vector<8x32xf32>
    %86 = arith.divf %81, %85 : vector<8x32xf32>
    %87 = vector.broadcast %67 : vector<1x32xf32> to vector<8x32xf32>
    %88 = arith.mulf %86, %87 : vector<8x32xf32>
    %89 = vector.broadcast %68 : vector<1x32xf32> to vector<8x32xf32>
    %90 = arith.addf %88, %89 : vector<8x32xf32>
    %c0_40 = arith.constant 0 : index
    %c0_41 = arith.constant 0 : index
    %c0_42 = arith.constant 0 : index
    %91 = vector.load %arg14[%c0_40, %c0_41, %c0_42] : memref<1x8x32xf32, #tpu.memory_space<vmem>>, vector<1x8x32xf32>
    %92 = vector.shape_cast %91 : vector<1x8x32xf32> to vector<8x32xf32>
    %93 = vector.shape_cast %90 : vector<8x32xf32> to vector<1x8x32xf32>
    tpu.vector_store %arg14[%c0_40, %c0_41, %c0_42], %93 {strides = array<i32>} : memref<1x8x32xf32, #tpu.memory_space<vmem>>, vector<1x8x32xf32>,
    return
  }
  func.func @transform_0(%arg0: i32, %arg1: i32) -> (i32, i32, i32, i32) {
    %c0_i32 = arith.constant 0 : i32
    %c0_i32_0 = arith.constant 0 : i32
    %c0_i32_1 = arith.constant 0 : i32
    return %arg0, %c0_i32, %arg1, %c0_i32_0 : i32, i32, i32, i32
  }
  func.func @transform_1(%arg0: i32, %arg1: i32) -> (i32, i32, i32) {
    %c0_i32 = arith.constant 0 : i32
    %c0_i32_0 = arith.constant 0 : i32
    return %arg0, %arg1, %c0_i32 : i32, i32, i32
  }
  func.func @transform_2(%arg0: i32, %arg1: i32) -> (i32, i32, i32) {
    %c0_i32 = arith.constant 0 : i32
    %c0_i32_0 = arith.constant 0 : i32
    %c0_i32_1 = arith.constant 0 : i32
    %c0_i32_2 = arith.constant 0 : i32
    return %c0_i32, %c0_i32_0, %c0_i32_1 : i32, i32, i32
  }
  func.func @transform_3(%arg0: i32, %arg1: i32) -> (i32, i32) {
    %c0_i32 = arith.constant 0 : i32
    %c0_i32_0 = arith.constant 0 : i32
    %c0_i32_1 = arith.constant 0 : i32
    return %c0_i32, %c0_i32_0 : i32, i32
  }
  func.func @transform_4(%arg0: i32, %arg1: i32) -> (i32, i32) {
    %c0_i32 = arith.constant 0 : i32
    %c0_i32_0 = arith.constant 0 : i32
    %c0_i32_1 = arith.constant 0 : i32
    return %c0_i32, %c0_i32_0 : i32, i32
  }
  func.func @transform_5(%arg0: i32, %arg1: i32) -> (i32, i32) {
    %c0_i32 = arith.constant 0 : i32
    %c0_i32_0 = arith.constant 0 : i32
    %c0_i32_1 = arith.constant 0 : i32
    return %c0_i32, %c0_i32_0 : i32, i32
  }
  func.func @transform_6(%arg0: i32, %arg1: i32) -> (i32, i32, i32) {
    %c0_i32 = arith.constant 0 : i32
    %c0_i32_0 = arith.constant 0 : i32
    %c0_i32_1 = arith.constant 0 : i32
    %c0_i32_2 = arith.constant 0 : i32
    return %c0_i32, %c0_i32_0, %c0_i32_1 : i32, i32, i32
  }
  func.func @transform_7(%arg0: i32, %arg1: i32) -> (i32, i32, i32) {
    %c0_i32 = arith.constant 0 : i32
    %c0_i32_0 = arith.constant 0 : i32
    %c0_i32_1 = arith.constant 0 : i32
    %c0_i32_2 = arith.constant 0 : i32
    return %c0_i32, %c0_i32_0, %c0_i32_1 : i32, i32, i32
  }
  func.func @transform_8(%arg0: i32, %arg1: i32) -> (i32, i32, i32) {
    %c0_i32 = arith.constant 0 : i32
    %c0_i32_0 = arith.constant 0 : i32
    %c0_i32_1 = arith.constant 0 : i32
    %c0_i32_2 = arith.constant 0 : i32
    return %c0_i32, %c0_i32_0, %c0_i32_1 : i32, i32, i32
  }
  func.func @transform_9(%arg0: i32, %arg1: i32) -> (i32, i32) {
    %c0_i32 = arith.constant 0 : i32
    %c0_i32_0 = arith.constant 0 : i32
    %c0_i32_1 = arith.constant 0 : i32
    return %c0_i32, %c0_i32_0 : i32, i32
  }
  func.func @transform_10(%arg0: i32, %arg1: i32) -> (i32, i32) {
    %c0_i32 = arith.constant 0 : i32
    %c0_i32_0 = arith.constant 0 : i32
    %c0_i32_1 = arith.constant 0 : i32
    return %c0_i32, %c0_i32_0 : i32, i32
  }
  func.func @transform_11(%arg0: i32, %arg1: i32) -> (i32, i32) {
    %c0_i32 = arith.constant 0 : i32
    %c0_i32_0 = arith.constant 0 : i32
    %c0_i32_1 = arith.constant 0 : i32
    return %c0_i32, %c0_i32_0 : i32, i32
  }
  func.func @transform_12(%arg0: i32, %arg1: i32) -> (i32, i32, i32) {
    %c0_i32 = arith.constant 0 : i32
    %c0_i32_0 = arith.constant 0 : i32
    return %arg0, %arg1, %c0_i32 : i32, i32, i32
  }
}

</mosaic_0001>

<llo_original>
// kernel: bert_layer_forward.3
$region0: #{bert_layer_forward.3}
  #allocation0 [shape = 'u32[]', space=smem, size = 0x4, offset = 0x4, fixed_abs, tag = 'smem constant byte address 0x4 - core index']
  #allocation1 [shape = 'u32[144,128]{1,0:T(1,128)}', space=vmem, size = 0x12000, scoped, tag = 'internal scratch']
  %s0 = inlined_call_operand.vmem [shape: bf16[2,4,8,8], index: 0, kind: input, shape index: {}]
  %s1 = inlined_call_operand.vmem [shape: f32[2,8,32], index: 1, kind: input, shape index: {}]
  %s2 = inlined_call_operand.vmem [shape: bf16[4,8,32], index: 2, kind: input, shape index: {}]
  %s3 = inlined_call_operand.vmem [shape: f32[1,32], index: 3, kind: input, shape index: {}]
  %s4 = inlined_call_operand.vmem [shape: f32[1,32], index: 4, kind: input, shape index: {}]
  %s5 = inlined_call_operand.vmem [shape: f32[1,32], index: 5, kind: input, shape index: {}]
  %s6 = inlined_call_operand.vmem [shape: bf16[1,32,64], index: 6, kind: input, shape index: {}]
  %s7 = inlined_call_operand.vmem [shape: f32[1,1,64], index: 7, kind: input, shape index: {}]
  %s8 = inlined_call_operand.vmem [shape: bf16[1,64,32], index: 8, kind: input, shape index: {}]
  %s9 = inlined_call_operand.vmem [shape: f32[1,32], index: 9, kind: input, shape index: {}]
  %s10 = inlined_call_operand.vmem [shape: f32[1,32], index: 10, kind: input, shape index: {}]
  %s11 = inlined_call_operand.vmem [shape: f32[1,32], index: 11, kind: input, shape index: {}]
  %s12 = inlined_call_operand.hbm [shape: f32[2,8,32], index: 12, kind: output, shape index: {}]
  %s13 = sld [smem:[#allocation0]]
  $region88: #{bert_layer_forward.3} parent=0
    _
  %s15 = ssub.s32 1, %s13
  %s16 = scalar_select 0, %s15, %s13
  $region1: #{bert_layer_forward.3} parent=0
    #allocation2 [shape = 'u8[8192]{0}', space=vmem, size = 0x2000, scoped, tag = 'output window, operand 0']
    #allocation3 [shape = 's32[2]{0}', space=sflag, size = 0x8, scoped, tag = 'scoped memory for bert_layer_forward.3']
    %17 = vsyncpa [#allocation3], 0
    %s18 = scalar_lea.sflag [#allocation3], 1
    %19 = vsyncpa %s18, 0
    loop: start=0, step=1, limit=4
    $region2: #{bert_layer_forward.3} parent=1 // loop_pre_header
      _
    $region3: #{bert_layer_forward.3} parent=1 // loop_header
      %s21 = sphi 0, %s25
      %p22 = scmp.ge.s32.totalorder %s21, 4
      %s28 = sphi 0, %s40
      %s29 = sphi 0, %s36
      %s30 = sphi 0, %s28
      %s31 = sphi 0, %s29
      %s32 = sphi 0, %s30
      %s33 = sphi 0, %s31
      %s45 = sphi 0, %s47
      %s48 = sphi 0, %s45
      %s49 = sphi 0, %s48
      %s65 = sphi 0, %s49
      %s73 = sphi 0, %s75
      %s76 = sphi 0, %s73
      %s77 = sphi 0, %s76
      %s93 = sphi 0, %s77
      %s97 = sphi 0, %s97
      %s99 = sphi 0, %s97
      %s100 = sphi 0, %s99
      %s114 = sphi 0, %s100
      %s118 = sphi 0, %s118
      %s120 = sphi 0, %s118
      %s121 = sphi 0, %s120
      %s135 = sphi 0, %s121
      %s139 = sphi 0, %s139
      %s141 = sphi 0, %s139
      %s142 = sphi 0, %s141
      %s156 = sphi 0, %s142
      %s160 = sphi 0, %s160
      %s162 = sphi 0, %s160
      %s163 = sphi 0, %s162
      %s177 = sphi 0, %s163
      %s181 = sphi 0, %s181
      %s183 = sphi 0, %s181
      %s184 = sphi 0, %s183
      %s198 = sphi 0, %s184
      %s202 = sphi 0, %s202
      %s204 = sphi 0, %s202
      %s205 = sphi 0, %s204
      %s219 = sphi 0, %s205
      %s223 = sphi 0, %s223
      %s225 = sphi 0, %s223
      %s226 = sphi 0, %s225
      %s240 = sphi 0, %s226
      %s244 = sphi 0, %s244
      %s246 = sphi 0, %s244
      %s247 = sphi 0, %s246
      %s261 = sphi 0, %s247
      %s265 = sphi 0, %s265
      %s267 = sphi 0, %s265
      %s268 = sphi 0, %s267
      %s282 = sphi 0, %s268
      %s286 = sphi 0, %s286
      %s288 = sphi 0, %s286
      %s289 = sphi 0, %s288
      %s303 = sphi 0, %s289
      %s311 = sphi 0, %s313
      %s314 = sphi 0, %s311
      %s315 = sphi 0, %s314
      %s331 = sphi 0, %s315
    $region4: #{bert_layer_forward.3} parent=1 // loop_header_branch
      %24 = sbr.rel (%p22) target = $region8
    $region5: #{bert_layer_forward.3} parent=1 // loop_body
      %s26 = ssub.s32 %s21, 1
      %s27 = ssub.s32 %s21, 2
      %s34 = sadd.s32 1, %s29
      %p35 = scmp.ge.s32.totalorder %s34, 1
      %s36 = scalar_select %p35, 0, %s34
      %s37 = sadd.s32 1, %s28
      %s38 = scalar_select %p35, %s37, %s28
      %p39 = scmp.ge.s32.totalorder %s38, 2
      %s40 = scalar_select %p39, 0, %s38
      %s41 = ssub.s32 %s28, %s40
      %s42 = ssub.s32 %s29, %s36
      %s43 = sor.u32 %s41, %s42
      %p44 = scmp.eq.s32.totalorder %s43, 0
      %s46 = sadd.s32 %s45, 1
      %s47 = scalar_select %p44, %s45, %s46
      %p50 = pneg %p44
      %p51 = scmp.eq.s32.totalorder %s21, 1
      %p52 = por %p50, %p51
      %p53 = scmp.ne.s32.totalorder %s45, %s48
      %p54 = scmp.eq.s32.totalorder %s21, 0
      %p55 = por %p53, %p54
      %p56 = scmp.ne.s32.totalorder %s45, %s48
      %p57 = scmp.eq.s32.totalorder %s26, 1
      %p58 = por %p56, %p57
      %p59 = scmp.ne.s32.totalorder %s48, %s49
      %p60 = scmp.eq.s32.totalorder %s26, 0
      %p61 = por %p59, %p60
      %p62 = scmp.ne.s32.totalorder %s48, %s49
      %p63 = scmp.eq.s32.totalorder %s27, 1
      %p64 = por %p62, %p63
      %p66 = scmp.ne.s32.totalorder %s49, %s65
      %p67 = scmp.eq.s32.totalorder %s27, 0
      %p68 = por %p66, %p67
      %s69 = ssub.s32 %s28, %s40
      %s70 = ssub.s32 %s29, %s36
      %s71 = sor.u32 %s69, %s70
      %p72 = scmp.eq.s32.totalorder %s71, 0
      %s74 = sadd.s32 %s73, 1
      %s75 = scalar_select %p72, %s73, %s74
      %p78 = pneg %p72
      %p79 = scmp.eq.s32.totalorder %s21, 1
      %p80 = por %p78, %p79
      %p81 = scmp.ne.s32.totalorder %s73, %s76
      %p82 = scmp.eq.s32.totalorder %s21, 0
      %p83 = por %p81, %p82
      %p84 = scmp.ne.s32.totalorder %s73, %s76
      %p85 = scmp.eq.s32.totalorder %s26, 1
      %p86 = por %p84, %p85
      %p87 = scmp.ne.s32.totalorder %s76, %s77
      %p88 = scmp.eq.s32.totalorder %s26, 0
      %p89 = por %p87, %p88
      %p90 = scmp.ne.s32.totalorder %s76, %s77
      %p91 = scmp.eq.s32.totalorder %s27, 1
      %p92 = por %p90, %p91
      %p94 = scmp.ne.s32.totalorder %s77, %s93
      %p95 = scmp.eq.s32.totalorder %s27, 0
      %p96 = por %p94, %p95
      %s98 = sadd.s32 %s97, 1
      %p101 = scmp.eq.s32.totalorder %s21, 1
      %p102 = scmp.ne.s32.totalorder %s97, %s99
      %p103 = scmp.eq.s32.totalorder %s21, 0
      %p104 = por %p102, %p103
      %p105 = scmp.ne.s32.totalorder %s97, %s99
      %p106 = scmp.eq.s32.totalorder %s26, 1
      %p107 = por %p105, %p106
      %p108 = scmp.ne.s32.totalorder %s99, %s100
      %p109 = scmp.eq.s32.totalorder %s26, 0
      %p110 = por %p108, %p109
      %p111 = scmp.ne.s32.totalorder %s99, %s100
      %p112 = scmp.eq.s32.totalorder %s27, 1
      %p113 = por %p111, %p112
      %p115 = scmp.ne.s32.totalorder %s100, %s114
      %p116 = scmp.eq.s32.totalorder %s27, 0
      %p117 = por %p115, %p116
      %s119 = sadd.s32 %s118, 1
      %p122 = scmp.eq.s32.totalorder %s21, 1
      %p123 = scmp.ne.s32.totalorder %s118, %s120
      %p124 = scmp.eq.s32.totalorder %s21, 0
      %p125 = por %p123, %p124
      %p126 = scmp.ne.s32.totalorder %s118, %s120
      %p127 = scmp.eq.s32.totalorder %s26, 1
      %p128 = por %p126, %p127
      %p129 = scmp.ne.s32.totalorder %s120, %s121
      %p130 = scmp.eq.s32.totalorder %s26, 0
      %p131 = por %p129, %p130
      %p132 = scmp.ne.s32.totalorder %s120, %s121
      %p133 = scmp.eq.s32.totalorder %s27, 1
      %p134 = por %p132, %p133
      %p136 = scmp.ne.s32.totalorder %s121, %s135
      %p137 = scmp.eq.s32.totalorder %s27, 0
      %p138 = por %p136, %p137
      %s140 = sadd.s32 %s139, 1
      %p143 = scmp.eq.s32.totalorder %s21, 1
      %p144 = scmp.ne.s32.totalorder %s139, %s141
      %p145 = scmp.eq.s32.totalorder %s21, 0
      %p146 = por %p144, %p145
      %p147 = scmp.ne.s32.totalorder %s139, %s141
      %p148 = scmp.eq.s32.totalorder %s26, 1
      %p149 = por %p147, %p148
      %p150 = scmp.ne.s32.totalorder %s141, %s142
      %p151 = scmp.eq.s32.totalorder %s26, 0
      %p152 = por %p150, %p151
      %p153 = scmp.ne.s32.totalorder %s141, %s142
      %p154 = scmp.eq.s32.totalorder %s27, 1
      %p155 = por %p153, %p154
      %p157 = scmp.ne.s32.totalorder %s142, %s156
      %p158 = scmp.eq.s32.totalorder %s27, 0
      %p159 = por %p157, %p158
      %s161 = sadd.s32 %s160, 1
      %p164 = scmp.eq.s32.totalorder %s21, 1
      %p165 = scmp.ne.s32.totalorder %s160, %s162
      %p166 = scmp.eq.s32.totalorder %s21, 0
      %p167 = por %p165, %p166
      %p168 = scmp.ne.s32.totalorder %s160, %s162
      %p169 = scmp.eq.s32.totalorder %s26, 1
      %p170 = por %p168, %p169
      %p171 = scmp.ne.s32.totalorder %s162, %s163
      %p172 = scmp.eq.s32.totalorder %s26, 0
      %p173 = por %p171, %p172
      %p174 = scmp.ne.s32.totalorder %s162, %s163
      %p175 = scmp.eq.s32.totalorder %s27, 1
      %p176 = por %p174, %p175
      %p178 = scmp.ne.s32.totalorder %s163, %s177
      %p179 = scmp.eq.s32.totalorder %s27, 0
      %p180 = por %p178, %p179
      %s182 = sadd.s32 %s181, 1
      %p185 = scmp.eq.s32.totalorder %s21, 1
      %p186 = scmp.ne.s32.totalorder %s181, %s183
      %p187 = scmp.eq.s32.totalorder %s21, 0
      %p188 = por %p186, %p187
      %p189 = scmp.ne.s32.totalorder %s181, %s183
      %p190 = scmp.eq.s32.totalorder %s26, 1
      %p191 = por %p189, %p190
      %p192 = scmp.ne.s32.totalorder %s183, %s184
      %p193 = scmp.eq.s32.totalorder %s26, 0
      %p194 = por %p192, %p193
      %p195 = scmp.ne.s32.totalorder %s183, %s184
      %p196 = scmp.eq.s32.totalorder %s27, 1
      %p197 = por %p195, %p196
      %p199 = scmp.ne.s32.totalorder %s184, %s198
      %p200 = scmp.eq.s32.totalorder %s27, 0
      %p201 = por %p199, %p200
      %s203 = sadd.s32 %s202, 1
      %p206 = scmp.eq.s32.totalorder %s21, 1
      %p207 = scmp.ne.s32.totalorder %s202, %s204
      %p208 = scmp.eq.s32.totalorder %s21, 0
      %p209 = por %p207, %p208
      %p210 = scmp.ne.s32.totalorder %s202, %s204
      %p211 = scmp.eq.s32.totalorder %s26, 1
      %p212 = por %p210, %p211
      %p213 = scmp.ne.s32.totalorder %s204, %s205
      %p214 = scmp.eq.s32.totalorder %s26, 0
      %p215 = por %p213, %p214
      %p216 = scmp.ne.s32.totalorder %s204, %s205
      %p217 = scmp.eq.s32.totalorder %s27, 1
      %p218 = por %p216, %p217
      %p220 = scmp.ne.s32.totalorder %s205, %s219
      %p221 = scmp.eq.s32.totalorder %s27, 0
      %p222 = por %p220, %p221
      %s224 = sadd.s32 %s223, 1
      %p227 = scmp.eq.s32.totalorder %s21, 1
      %p228 = scmp.ne.s32.totalorder %s223, %s225
      %p229 = scmp.eq.s32.totalorder %s21, 0
      %p230 = por %p228, %p229
      %p231 = scmp.ne.s32.totalorder %s223, %s225
      %p232 = scmp.eq.s32.totalorder %s26, 1
      %p233 = por %p231, %p232
      %p234 = scmp.ne.s32.totalorder %s225, %s226
      %p235 = scmp.eq.s32.totalorder %s26, 0
      %p236 = por %p234, %p235
      %p237 = scmp.ne.s32.totalorder %s225, %s226
      %p238 = scmp.eq.s32.totalorder %s27, 1
      %p239 = por %p237, %p238
      %p241 = scmp.ne.s32.totalorder %s226, %s240
      %p242 = scmp.eq.s32.totalorder %s27, 0
      %p243 = por %p241, %p242
      %s245 = sadd.s32 %s244, 1
      %p248 = scmp.eq.s32.totalorder %s21, 1
      %p249 = scmp.ne.s32.totalorder %s244, %s246
      %p250 = scmp.eq.s32.totalorder %s21, 0
      %p251 = por %p249, %p250
      %p252 = scmp.ne.s32.totalorder %s244, %s246
      %p253 = scmp.eq.s32.totalorder %s26, 1
      %p254 = por %p252, %p253
      %p255 = scmp.ne.s32.totalorder %s246, %s247
      %p256 = scmp.eq.s32.totalorder %s26, 0
      %p257 = por %p255, %p256
      %p258 = scmp.ne.s32.totalorder %s246, %s247
      %p259 = scmp.eq.s32.totalorder %s27, 1
      %p260 = por %p258, %p259
      %p262 = scmp.ne.s32.totalorder %s247, %s261
      %p263 = scmp.eq.s32.totalorder %s27, 0
      %p264 = por %p262, %p263
      %s266 = sadd.s32 %s265, 1
      %p269 = scmp.eq.s32.totalorder %s21, 1
      %p270 = scmp.ne.s32.totalorder %s265, %s267
      %p271 = scmp.eq.s32.totalorder %s21, 0
      %p272 = por %p270, %p271
      %p273 = scmp.ne.s32.totalorder %s265, %s267
      %p274 = scmp.eq.s32.totalorder %s26, 1
      %p275 = por %p273, %p274
      %p276 = scmp.ne.s32.totalorder %s267, %s268
      %p277 = scmp.eq.s32.totalorder %s26, 0
      %p278 = por %p276, %p277
      %p279 = scmp.ne.s32.totalorder %s267, %s268
      %p280 = scmp.eq.s32.totalorder %s27, 1
      %p281 = por %p279, %p280
      %p283 = scmp.ne.s32.totalorder %s268, %s282
      %p284 = scmp.eq.s32.totalorder %s27, 0
      %p285 = por %p283, %p284
      %s287 = sadd.s32 %s286, 1
      %p290 = scmp.eq.s32.totalorder %s21, 1
      %p291 = scmp.ne.s32.totalorder %s286, %s288
      %p292 = scmp.eq.s32.totalorder %s21, 0
      %p293 = por %p291, %p292
      %p294 = scmp.ne.s32.totalorder %s286, %s288
      %p295 = scmp.eq.s32.totalorder %s26, 1
      %p296 = por %p294, %p295
      %p297 = scmp.ne.s32.totalorder %s288, %s289
      %p298 = scmp.eq.s32.totalorder %s26, 0
      %p299 = por %p297, %p298
      %p300 = scmp.ne.s32.totalorder %s288, %s289
      %p301 = scmp.eq.s32.totalorder %s27, 1
      %p302 = por %p300, %p301
      %p304 = scmp.ne.s32.totalorder %s289, %s303
      %p305 = scmp.eq.s32.totalorder %s27, 0
      %p306 = por %p304, %p305
      %s307 = ssub.s32 %s28, %s40
      %s308 = ssub.s32 %s29, %s36
      %s309 = sor.u32 %s307, %s308
      %p310 = scmp.eq.s32.totalorder %s309, 0
      %s312 = sadd.s32 %s311, 1
      %s313 = scalar_select %p310, %s311, %s312
      %p316 = pneg %p310
      %p317 = scmp.eq.s32.totalorder %s21, 1
      %p318 = por %p316, %p317
      %p319 = scmp.ne.s32.totalorder %s311, %s314
      %p320 = scmp.eq.s32.totalorder %s21, 0
      %p321 = por %p319, %p320
      %p322 = scmp.ne.s32.totalorder %s311, %s314
      %p323 = scmp.eq.s32.totalorder %s26, 1
      %p324 = por %p322, %p323
      %p325 = scmp.ne.s32.totalorder %s314, %s315
      %p326 = scmp.eq.s32.totalorder %s26, 0
      %p327 = por %p325, %p326
      %p328 = scmp.ne.s32.totalorder %s314, %s315
      %p329 = scmp.eq.s32.totalorder %s27, 1
      %p330 = por %p328, %p329
      %p332 = scmp.ne.s32.totalorder %s315, %s331
      %p333 = scmp.eq.s32.totalorder %s27, 0
      %p334 = por %p332, %p333
      %p335 = scmp.le.s32.totalorder 1, %s21
      %p336 = scmp.lt.s32.totalorder %s21, 3
      %p337 = pnand %p335, %p336
      %p338 = pneg %p337
      // Predicated region
      $region9: #{bert_layer_forward.3} parent=5 // pred_check
        _
      $region10: #{bert_layer_forward.3} parent=5 // pred_check_branch
        %340 = sbr.rel (%p337) target = $region12
      $region11: #{bert_layer_forward.3} parent=5 // pred_region
        %s341 = ssub.s32 %s21, 1
        // Predicated region
        $region13: #{bert_layer_forward.3} parent=11 // pred_check
          %p342 = pneg %p110
        $region14: #{bert_layer_forward.3} parent=11 // pred_check_branch
          %344 = sbr.rel (%p342) target = $region16
        $region15: #{bert_layer_forward.3} parent=11 // pred_region
          _
        $region16: #{bert_layer_forward.3} parent=11 // pred_fallthru
          _
        // Predicated region
        $region17: #{bert_layer_forward.3} parent=11 // pred_check
          %p345 = pneg %p131
        $region18: #{bert_layer_forward.3} parent=11 // pred_check_branch
          %347 = sbr.rel (%p345) target = $region20
        $region19: #{bert_layer_forward.3} parent=11 // pred_region
          _
        $region20: #{bert_layer_forward.3} parent=11 // pred_fallthru
          _
        // Predicated region
        $region21: #{bert_layer_forward.3} parent=11 // pred_check
          %p348 = pneg %p152
        $region22: #{bert_layer_forward.3} parent=11 // pred_check_branch
          %350 = sbr.rel (%p348) target = $region24
        $region23: #{bert_layer_forward.3} parent=11 // pred_region
          _
        $region24: #{bert_layer_forward.3} parent=11 // pred_fallthru
          _
        // Predicated region
        $region25: #{bert_layer_forward.3} parent=11 // pred_check
          %p351 = pneg %p173
        $region26: #{bert_layer_forward.3} parent=11 // pred_check_branch
          %353 = sbr.rel (%p351) target = $region28
        $region27: #{bert_layer_forward.3} parent=11 // pred_region
          _
        $region28: #{bert_layer_forward.3} parent=11 // pred_fallthru
          _
        // Predicated region
        $region29: #{bert_layer_forward.3} parent=11 // pred_check
          %p354 = pneg %p194
        $region30: #{bert_layer_forward.3} parent=11 // pred_check_branch
          %356 = sbr.rel (%p354) target = $region32
        $region31: #{bert_layer_forward.3} parent=11 // pred_region
          _
        $region32: #{bert_layer_forward.3} parent=11 // pred_fallthru
          _
        // Predicated region
        $region33: #{bert_layer_forward.3} parent=11 // pred_check
          %p357 = pneg %p215
        $region34: #{bert_layer_forward.3} parent=11 // pred_check_branch
          %359 = sbr.rel (%p357) target = $region36
        $region35: #{bert_layer_forward.3} parent=11 // pred_region
          _
        $region36: #{bert_layer_forward.3} parent=11 // pred_fallthru
          _
        // Predicated region
        $region37: #{bert_layer_forward.3} parent=11 // pred_check
          %p360 = pneg %p236
        $region38: #{bert_layer_forward.3} parent=11 // pred_check_branch
          %362 = sbr.rel (%p360) target = $region40
        $region39: #{bert_layer_forward.3} parent=11 // pred_region
          _
        $region40: #{bert_layer_forward.3} parent=11 // pred_fallthru
          _
        // Predicated region
        $region41: #{bert_layer_forward.3} parent=11 // pred_check
          %p363 = pneg %p257
        $region42: #{bert_layer_forward.3} parent=11 // pred_check_branch
          %365 = sbr.rel (%p363) target = $region44
        $region43: #{bert_layer_forward.3} parent=11 // pred_region
          _
        $region44: #{bert_layer_forward.3} parent=11 // pred_fallthru
          _
        // Predicated region
        $region45: #{bert_layer_forward.3} parent=11 // pred_check
          %p366 = pneg %p278
        $region46: #{bert_layer_forward.3} parent=11 // pred_check_branch
          %368 = sbr.rel (%p366) target = $region48
        $region47: #{bert_layer_forward.3} parent=11 // pred_region
          _
        $region48: #{bert_layer_forward.3} parent=11 // pred_fallthru
          _
        // Predicated region
        $region49: #{bert_layer_forward.3} parent=11 // pred_check
          %p369 = pneg %p299
        $region50: #{bert_layer_forward.3} parent=11 // pred_check_branch
          %371 = sbr.rel (%p369) target = $region52
        $region51: #{bert_layer_forward.3} parent=11 // pred_region
          _
        $region52: #{bert_layer_forward.3} parent=11 // pred_fallthru
          _
      $region12: #{bert_layer_forward.3} parent=5 // pred_fallthru
        _
      %p372 = scmp.lt.s32.totalorder %s21, 2
      // Predicated region
      $region53: #{bert_layer_forward.3} parent=5 // pred_check
        %p373 = pneg %p372
      $region54: #{bert_layer_forward.3} parent=5 // pred_check_branch
        %375 = sbr.rel (%p373) target = $region56
      $region55: #{bert_layer_forward.3} parent=5 // pred_region
        // Predicated region
        $region57: #{bert_layer_forward.3} parent=55 // pred_check
          %p376 = pneg %p55
        $region58: #{bert_layer_forward.3} parent=55 // pred_check_branch
          %378 = sbr.rel (%p376) target = $region60
        $region59: #{bert_layer_forward.3} parent=55 // pred_region
          %p379 = scmp.lt.s32.totalorder %s28, 1
          %s380 = scalar_select %p379, %s28, 1
          %p381 = scmp.lt.s32.totalorder %s29, 0
          %s382 = scalar_select %p381, %s29, 0
          %s383 = smul.addr %s380, 4
          %s384 = sadd.s32 %s382, %s383
          %s385 = smul.addr %s384, 4
          %s386 = scalar_lea.vmem %s0, %s385
        $region60: #{bert_layer_forward.3} parent=55 // pred_fallthru
          _
        // Predicated region
        $region61: #{bert_layer_forward.3} parent=55 // pred_check
          %p387 = pneg %p83
        $region62: #{bert_layer_forward.3} parent=55 // pred_check_branch
          %389 = sbr.rel (%p387) target = $region64
        $region63: #{bert_layer_forward.3} parent=55 // pred_region
          %p390 = scmp.lt.s32.totalorder %s28, 1
          %s391 = scalar_select %p390, %s28, 1
          %p392 = scmp.lt.s32.totalorder %s29, 0
          %s393 = scalar_select %p392, %s29, 0
          %s394 = sadd.s32 %s393, %s391
          %s395 = smul.addr %s394, 8
          %s396 = scalar_lea.vmem %s1, %s395
        $region64: #{bert_layer_forward.3} parent=55 // pred_fallthru
          _
      $region56: #{bert_layer_forward.3} parent=5 // pred_fallthru
        _
      %p397 = scmp.le.s32.totalorder 1, %s21
      %p398 = scmp.lt.s32.totalorder %s21, 3
      %p399 = pnand %p397, %p398
      %p400 = pneg %p399
      // Predicated region
      $region65: #{bert_layer_forward.3} parent=5 // pred_check
        _
      $region66: #{bert_layer_forward.3} parent=5 // pred_check_branch
        %402 = sbr.rel (%p399) target = $region68
      $region67: #{bert_layer_forward.3} parent=5 // pred_region
        %s403 = ssub.s32 %s21, 1
        %p404 = scmp.lt.s32.totalorder %s30, 1
        %s405 = scalar_select %p404, %s30, 1
        %p406 = scmp.lt.s32.totalorder %s31, 0
        %s407 = scalar_select %p406, %s31, 0
        %s408 = smul.addr %s405, 4
        %s409 = sadd.s32 %s407, %s408
        %s410 = smul.addr %s409, 4
        %s411 = scalar_lea.vmem %s0, %s410
        %p412 = pneg %p61
        %p413 = pneg %p58
        %p414 = scmp.lt.s32.totalorder %s30, 1
        %s415 = scalar_select %p414, %s30, 1
        %p416 = scmp.lt.s32.totalorder %s31, 0
        %s417 = scalar_select %p416, %s31, 0
        %s418 = sadd.s32 %s417, %s415
        %s419 = smul.addr %s418, 8
        %s420 = scalar_lea.vmem %s1, %s419
        %p421 = pneg %p89
        %p422 = pneg %p86
        %p423 = pneg %p110
        %p424 = pneg %p107
        %p425 = pneg %p131
        %p426 = pneg %p128
        %p427 = pneg %p152
        %p428 = pneg %p149
        %p429 = pneg %p173
        %p430 = pneg %p170
        %p431 = pneg %p194
        %p432 = pneg %p191
        %p433 = pneg %p215
        %p434 = pneg %p212
        %p435 = pneg %p236
        %p436 = pneg %p233
        %p437 = pneg %p257
        %p438 = pneg %p254
        %p439 = pneg %p278
        %p440 = pneg %p275
        %p441 = pneg %p299
        %p442 = pneg %p296
        %p443 = pneg %p327
        %p444 = pneg %p324
        %s445 = sand.u32 %s314, 1
        %s446 = scalar_lea.sflag [#allocation3], %s445
        %s447 = sand.u32 %s314, 1
        %s448 = smul.addr %s447, 8
        %s449 = scalar_lea.vmem [#allocation2], %s448
        %p450 = scmp.lt.s32.totalorder %s30, 1
        %s451 = scalar_select %p450, %s30, 1
        %p452 = scmp.lt.s32.totalorder %s31, 0
        %s453 = scalar_select %p452, %s31, 0
        %s454 = smul.addr %s451, 4
        %s455 = sadd.s32 %s453, %s454
        %s456 = smul.addr %s455, 4
        %s457 = scalar_lea.vmem %s0, %s456
        %p458 = scmp.lt.s32.totalorder %s30, 1
        %s459 = scalar_select %p458, %s30, 1
        %p460 = scmp.lt.s32.totalorder %s31, 0
        %s461 = scalar_select %p460, %s31, 0
        %s462 = sadd.s32 %s461, %s459
        %s463 = smul.addr %s462, 8
        %s464 = scalar_lea.vmem %s1, %s463
        %v466 = vld [vmem:[%s464] sm:$0xff]
        %v467 = vld [vmem:[%s3] sm:$0x1]
        %v469 = vlaneseq
        %v470 = vshrl.u32 %v469, 7
        %v471 = vsub.s32 0, %v470
        %v472 = vrot.slane %v467, %v471
        %v474 = vadd.f32 %v472, 0.0
        loop: start=0, step=1, limit=4
        $region69: #{bert_layer_forward.3} parent=67 // loop_pre_header
          _
        $region70: #{bert_layer_forward.3} parent=67 // loop_header
          %s476 = sphi 0, %s480
          %p477 = scmp.ge.s32.totalorder %s476, 4
          %v481 = vphi %v474, %v536
        $region71: #{bert_layer_forward.3} parent=67 // loop_header_branch
          %479 = sbr.rel (%p477) target = $region75
        $region72: #{bert_layer_forward.3} parent=67 // loop_body
          %s482 = smul.addr %s476, 4
          %s483 = scalar_lea.vmem %s457, %s482
          %v484 = vld [vmem:[%s483] sm:$0xf]
          %s485 = smul.addr %s476, 4
          %s486 = scalar_lea.vmem %s2, %s485
          %v487 = vld [vmem:[%s486] sm:$0xf]
          %vm488 = vcmask 64512
          %v490 = vsel %vm488, %v484, 0
          %vm492 = vcmask 1043456
          %v494 = vsel %vm492, %v487, 0
          %496 = vmatprep.subr.bf16.mxu0 0
          %497 = vmatpush1.bf16.msra.mxu0 %v494
          %498 = vmatprep.subr.bf16.mxu0 0
          %499 = vmatpush1.bf16.msra.mxu0 0
          %500 = vmatprep.subr.bf16.mxu0 0
          %501 = vmatpush1.bf16.msra.mxu0 0
          %502 = vmatprep.subr.bf16.mxu0 0
          %503 = vmatpush1.bf16.msra.mxu0 0
          %504 = vmatprep.subr.bf16.mxu0 0
          %505 = vmatpush1.bf16.msra.mxu0 0
          %506 = vmatprep.subr.bf16.mxu0 0
          %507 = vmatpush1.bf16.msra.mxu0 0
          %508 = vmatprep.subr.bf16.mxu0 0
          %509 = vmatpush1.bf16.msra.mxu0 0
          %510 = vmatprep.subr.bf16.mxu0 0
          %511 = vmatpush1.bf16.msra.mxu0 0
          %512 = vmatprep.subr.bf16.mxu0 0
          %513 = vmatpush1.bf16.msra.mxu0 0
          %514 = vmatprep.subr.bf16.mxu0 0
          %515 = vmatpush1.bf16.msra.mxu0 0
          %516 = vmatprep.subr.bf16.mxu0 0
          %517 = vmatpush1.bf16.msra.mxu0 0
          %518 = vmatprep.subr.bf16.mxu0 0
          %519 = vmatpush1.bf16.msra.mxu0 0
          %520 = vmatprep.subr.bf16.mxu0 0
          %521 = vmatpush1.bf16.msra.mxu0 0
          %522 = vmatprep.subr.bf16.mxu0 0
          %523 = vmatpush1.bf16.msra.mxu0 0
          %524 = vmatprep.subr.bf16.mxu0 0
          %525 = vmatpush1.bf16.msra.mxu0 0
          %526 = vmatprep.subr.bf16.mxu0 0
          %527 = vmatpush1.bf16.msra.mxu0 0
          %528 = vmatprep.mubr.bf16.mxu0 0
          %529 = vmatmul.mubr.bf16.gmra.mrb[0].mxu0 %v490
          %v530 = vpop.f32.mrb[0].mxu0
          %v531 = vadd.f32 0.0, %v530
          %v532 = vpop.f32.mrb[0].mxu0
          %v533 = vpop.f32.mrb[0].mxu0
          %v534 = vpop.f32.mrb[0].mxu0
          %535 = vdwg.mxu0
          %v536 = vadd.f32 %v481, %v531
        $region73: #{bert_layer_forward.3} parent=67 // loop_footer
          %s480 = sadd.s32 1, %s476
        $region74: #{bert_layer_forward.3} parent=67 // loop_footer_branch
          %475 = sbr.rel target = $region70
        $region75: #{bert_layer_forward.3} parent=67 // loop_exit
          _
        %v537 = vadd.f32 %v481, %v466
        %v538 = vld [vmem:[%s4] sm:$0x1]
        %v539 = vld [vmem:[%s5] sm:$0x1]
        %vm540 = vcmask 261120
        %v541 = vsel %vm540, %v537, 0.0
        %542 = vadd.xlane.f32.xlu0 %v541
        %v543 = vpop.xlane.xlu0 %542
        %v544 = vrcp.pop 32.0
        %v545 = vmul.f32 %v543, %v544
        %v546 = vsub.f32 %v537, %v545
        %v547 = vmul.f32 %v546, %v546
        %v548 = vsel %vm540, %v547, 0.0
        %549 = vadd.xlane.f32.xlu0 %v548
        %v550 = vpop.xlane.xlu0 %549
        %v551 = vmul.f32 %v550, %v544
        %v552 = vadd.f32 %v551, 1e-12
        %v553 = vrsqrt.pop %v552
        %v554 = vmul.f32 %v552, %v553
        %vm555 = vcmp.eq.f32.partialorder %v552, inf
        %v556 = vsel %vm555, %v552, %v554
        %vm557 = vcmp.eq.f32.partialorder %v552, 0.0
        %v558 = vand.u32 %v552, 2147483648
        %v559 = vsel %vm557, %v558, %v556
        %v560 = vrcp.pop %v559
        %v561 = vmul.f32 %v546, %v560
        %v563 = vlaneseq
        %v564 = vshrl.u32 %v563, 7
        %v565 = vsub.s32 0, %v564
        %v566 = vrot.slane %v538, %v565
        %v568 = vmul.f32 %v561, %v566
        %v570 = vlaneseq
        %v571 = vshrl.u32 %v570, 7
        %v572 = vsub.s32 0, %v571
        %v573 = vrot.slane %v539, %v572
        %v575 = vadd.f32 %v568, %v573
        %v576 = vpack.c.bf16 %v575, %v575
        %v577 = vld [vmem:[%s9] sm:$0x1]
        %v579 = vlaneseq
        %v580 = vshrl.u32 %v579, 7
        %v581 = vsub.s32 0, %v580
        %v582 = vrot.slane %v577, %v581
        %v584 = vadd.f32 %v582, 0.0
        %v585 = vld [vmem:[%s6] sm:$0xf]
        %v586 = vld [vmem:[%s6 + $0x4] sm:$0xf]
        %v587 = vld [vmem:[%s6 + $0x8] sm:$0xf]
        %v588 = vld [vmem:[%s6 + $0xc] sm:$0xf]
        %v589 = vld [vmem:[%s7] sm:$0x1]
        %v591 = vlaneseq
        %v592 = vshrl.u32 %v591, 7
        %v593 = vsub.s32 0, %v592
        %v594 = vrot.slane %v589, %v593
        %v600 = vunpack.c.l.b16 %v585
        %v601 = vunpack.c.l.b16 %v586
        %v602 = vunpack.c.l.b16 %v587
        %v603 = vunpack.c.l.b16 %v588
        %v604 = vpack.c.b16 %v601, %v600
        %v605 = vpack.c.b16 %v603, %v602
        %v609 = vsel %vm540, %v576, 0
        %611 = vmatprep.subr.bf16.mxu0 0
        %612 = vmatpush1.bf16.msra.mxu0 %v604
        %613 = vmatprep.subr.bf16.mxu0 0
        %614 = vmatpush1.bf16.msra.mxu0 %v605
        %615 = vmatprep.subr.bf16.mxu0 0
        %616 = vmatpush1.bf16.msra.mxu0 0
        %617 = vmatprep.subr.bf16.mxu0 0
        %618 = vmatpush1.bf16.msra.mxu0 0
        %619 = vmatprep.subr.bf16.mxu0 0
        %620 = vmatpush1.bf16.msra.mxu0 0
        %621 = vmatprep.subr.bf16.mxu0 0
        %622 = vmatpush1.bf16.msra.mxu0 0
        %623 = vmatprep.subr.bf16.mxu0 0
        %624 = vmatpush1.bf16.msra.mxu0 0
        %625 = vmatprep.subr.bf16.mxu0 0
        %626 = vmatpush1.bf16.msra.mxu0 0
        %627 = vmatprep.subr.bf16.mxu0 0
        %628 = vmatpush1.bf16.msra.mxu0 0
        %629 = vmatprep.subr.bf16.mxu0 0
        %630 = vmatpush1.bf16.msra.mxu0 0
        %631 = vmatprep.subr.bf16.mxu0 0
        %632 = vmatpush1.bf16.msra.mxu0 0
        %633 = vmatprep.subr.bf16.mxu0 0
        %634 = vmatpush1.bf16.msra.mxu0 0
        %635 = vmatprep.subr.bf16.mxu0 0
        %636 = vmatpush1.bf16.msra.mxu0 0
        %637 = vmatprep.subr.bf16.mxu0 0
        %638 = vmatpush1.bf16.msra.mxu0 0
        %639 = vmatprep.subr.bf16.mxu0 0
        %640 = vmatpush1.bf16.msra.mxu0 0
        %641 = vmatprep.subr.bf16.mxu0 0
        %642 = vmatpush1.bf16.msra.mxu0 0
        %643 = vmatprep.mubr.bf16.mxu0 0
        %644 = vmatmul.mubr.bf16.gmra.mrb[0].mxu0 %v609
        %v645 = vpop.f32.mrb[0].mxu0
        %v646 = vadd.f32 %v594, %v645
        %v647 = vpop.f32.mrb[0].mxu0
        %v648 = vpop.f32.mrb[0].mxu0
        %v649 = vpop.f32.mrb[0].mxu0
        %650 = vdwg.mxu0
        %v651 = vmul.f32 %v646, 0.5
        %v652 = vmul.f32 %v646, 0.044715
        %v653 = vmul.f32 %v652, %v646
        %v654 = vmul.f32 %v653, %v646
        %v655 = vadd.f32 %v646, %v654
        %v656 = vmul.f32 %v655, 0.7978846
        %v657 = vtanh.pop %v656
        %v658 = vadd.f32 %v657, 1.0
        %v659 = vmul.f32 %v651, %v658
        %v660 = vpack.c.bf16 %v659, %v659
        %v661 = vld [vmem:[%s8] sm:$0xf]
        %v662 = vld [vmem:[%s8 + $0x4] sm:$0xf]
        %v663 = vld [vmem:[%s8 + $0x8] sm:$0xf]
        %v664 = vld [vmem:[%s8 + $0xc] sm:$0xf]
        %v665 = vld [vmem:[%s8 + $0x10] sm:$0xf]
        %v666 = vld [vmem:[%s8 + $0x14] sm:$0xf]
        %v667 = vld [vmem:[%s8 + $0x18] sm:$0xf]
        %v668 = vld [vmem:[%s8 + $0x1c] sm:$0xf]
        %v677 = vunpack.c.l.b16 %v661
        %v678 = vunpack.c.l.b16 %v662
        %v679 = vunpack.c.l.b16 %v663
        %v680 = vunpack.c.l.b16 %v664
        %v681 = vunpack.c.l.b16 %v665
        %v682 = vunpack.c.l.b16 %v666
        %v683 = vunpack.c.l.b16 %v667
        %v684 = vunpack.c.l.b16 %v668
        %v685 = vpack.c.b16 %v678, %v677
        %v686 = vpack.c.b16 %v680, %v679
        %v687 = vpack.c.b16 %v682, %v681
        %v688 = vpack.c.b16 %v684, %v683
        %vm693 = vcmask 523264
        %v695 = vsel %vm693, %v660, 0
        %697 = vmatprep.subr.bf16.mxu0 0
        %698 = vmatpush1.bf16.msra.mxu0 %v685
        %699 = vmatprep.subr.bf16.mxu0 0
        %700 = vmatpush1.bf16.msra.mxu0 %v686
        %701 = vmatprep.subr.bf16.mxu0 0
        %702 = vmatpush1.bf16.msra.mxu0 %v687
        %703 = vmatprep.subr.bf16.mxu0 0
        %704 = vmatpush1.bf16.msra.mxu0 %v688
        %705 = vmatprep.subr.bf16.mxu0 0
        %706 = vmatpush1.bf16.msra.mxu0 0
        %707 = vmatprep.subr.bf16.mxu0 0
        %708 = vmatpush1.bf16.msra.mxu0 0
        %709 = vmatprep.subr.bf16.mxu0 0
        %710 = vmatpush1.bf16.msra.mxu0 0
        %711 = vmatprep.subr.bf16.mxu0 0
        %712 = vmatpush1.bf16.msra.mxu0 0
        %713 = vmatprep.subr.bf16.mxu0 0
        %714 = vmatpush1.bf16.msra.mxu0 0
        %715 = vmatprep.subr.bf16.mxu0 0
        %716 = vmatpush1.bf16.msra.mxu0 0
        %717 = vmatprep.subr.bf16.mxu0 0
        %718 = vmatpush1.bf16.msra.mxu0 0
        %719 = vmatprep.subr.bf16.mxu0 0
        %720 = vmatpush1.bf16.msra.mxu0 0
        %721 = vmatprep.subr.bf16.mxu0 0
        %722 = vmatpush1.bf16.msra.mxu0 0
        %723 = vmatprep.subr.bf16.mxu0 0
        %724 = vmatpush1.bf16.msra.mxu0 0
        %725 = vmatprep.subr.bf16.mxu0 0
        %726 = vmatpush1.bf16.msra.mxu0 0
        %727 = vmatprep.subr.bf16.mxu0 0
        %728 = vmatpush1.bf16.msra.mxu0 0
        %729 = vmatprep.mubr.bf16.mxu0 0
        %730 = vmatmul.mubr.bf16.gmra.mrb[0].mxu0 %v695
        %v731 = vpop.f32.mrb[0].mxu0
        %v732 = vadd.f32 0.0, %v731
        %v733 = vpop.f32.mrb[0].mxu0
        %v734 = vpop.f32.mrb[0].mxu0
        %v735 = vpop.f32.mrb[0].mxu0
        %736 = vdwg.mxu0
        %v737 = vadd.f32 %v584, %v732
        %v738 = vadd.f32 %v737, %v575
        %v739 = vld [vmem:[%s10] sm:$0x1]
        %v740 = vld [vmem:[%s11] sm:$0x1]
        %v741 = vsel %vm540, %v738, 0.0
        %742 = vadd.xlane.f32.xlu0 %v741
        %v743 = vpop.xlane.xlu0 %742
        %v744 = vmul.f32 %v743, %v544
        %v745 = vsub.f32 %v738, %v744
        %v746 = vmul.f32 %v745, %v745
        %v747 = vsel %vm540, %v746, 0.0
        %748 = vadd.xlane.f32.xlu0 %v747
        %v749 = vpop.xlane.xlu0 %748
        %v750 = vmul.f32 %v749, %v544
        %v751 = vadd.f32 %v750, 1e-12
        %v752 = vrsqrt.pop %v751
        %v753 = vmul.f32 %v751, %v752
        %vm754 = vcmp.eq.f32.partialorder %v751, inf
        %v755 = vsel %vm754, %v751, %v753
        %vm756 = vcmp.eq.f32.partialorder %v751, 0.0
        %v757 = vand.u32 %v751, 2147483648
        %v758 = vsel %vm756, %v757, %v755
        %v759 = vrcp.pop %v758
        %v760 = vmul.f32 %v745, %v759
        %v762 = vlaneseq
        %v763 = vshrl.u32 %v762, 7
        %v764 = vsub.s32 0, %v763
        %v765 = vrot.slane %v739, %v764
        %v767 = vmul.f32 %v760, %v765
        %v769 = vlaneseq
        %v770 = vshrl.u32 %v769, 7
        %v771 = vsub.s32 0, %v770
        %v772 = vrot.slane %v740, %v771
        %v774 = vadd.f32 %v767, %v772
        %775 = vst.msk [vmem:[%s449] sm:$0xff] %vm540, %v774
        %s776 = sand.u32 %s314, 1
        %s777 = scalar_lea.sflag [#allocation3], %s776
        %s778 = sand.u32 %s314, 1
        %s779 = smul.addr %s778, 8
        %s780 = scalar_lea.vmem [#allocation2], %s779
        // Predicated region
        $region76: #{bert_layer_forward.3} parent=67 // pred_check
          %p781 = pneg %p324
        $region77: #{bert_layer_forward.3} parent=67 // pred_check_branch
          %783 = sbr.rel (%p781) target = $region79
        $region78: #{bert_layer_forward.3} parent=67 // pred_region
          %s785 = ssub.s32 128, 128
          %786 = vsyncadd %s777, %s785
          %s787 = sadd.s32 %s31, %s30
          %s788 = smul.addr %s787, 128
          %s789 = scalar_lea.hbm %s12, %s788
          %s791 = sshll.u32 %s780, 4
          %s792 = int_to_ptr.vmem [resolvable:$true] %s791
          %794 = dma.vmem_to_hbm [thread:$0]  %s792, 128, %s789, %s777
        $region79: #{bert_layer_forward.3} parent=67 // pred_fallthru
          _
      $region68: #{bert_layer_forward.3} parent=5 // pred_fallthru
        _
      %p795 = scmp.le.s32.totalorder 2, %s21
      // Predicated region
      $region80: #{bert_layer_forward.3} parent=5 // pred_check
        %p796 = pneg %p795
      $region81: #{bert_layer_forward.3} parent=5 // pred_check_branch
        %798 = sbr.rel (%p796) target = $region83
      $region82: #{bert_layer_forward.3} parent=5 // pred_region
        %s799 = ssub.s32 %s21, 2
        // Predicated region
        $region84: #{bert_layer_forward.3} parent=82 // pred_check
          %p800 = pneg %p330
        $region85: #{bert_layer_forward.3} parent=82 // pred_check_branch
          %802 = sbr.rel (%p800) target = $region87
        $region86: #{bert_layer_forward.3} parent=82 // pred_region
          %s803 = sand.u32 %s315, 1
          %s804 = scalar_lea.sflag [#allocation3], %s803
          %s805 = sand.u32 %s315, 1
          %s806 = smul.addr %s805, 8
          %s807 = scalar_lea.vmem [#allocation2], %s806
          %808 = dma.done %s804, 128
        $region87: #{bert_layer_forward.3} parent=82 // pred_fallthru
          _
      $region83: #{bert_layer_forward.3} parent=5 // pred_fallthru
        _
    $region6: #{bert_layer_forward.3} parent=1 // loop_footer
      %s25 = sadd.s32 1, %s21
    $region7: #{bert_layer_forward.3} parent=1 // loop_footer_branch
      %20 = sbr.rel target = $region3
    $region8: #{bert_layer_forward.3} parent=1 // loop_exit
      _
    %809 = vsyncpa [#allocation3], 1
    %s810 = scalar_lea.sflag [#allocation3], 1
    %811 = vsyncpa %s810, 1

// kernel: bert_layer_forward.2
$region0: #{bert_layer_forward.2}
  #allocation0 [shape = 'u32[]', space=smem, size = 0x4, offset = 0x4, fixed_abs, tag = 'smem constant byte address 0x4 - core index']
  #allocation1 [shape = 'u32[144,128]{1,0:T(1,128)}', space=vmem, size = 0x12000, scoped, tag = 'internal scratch']
  %s0 = inlined_call_operand.vmem [shape: f32[2,8,32], index: 0, kind: input, shape index: {}]
  %s1 = inlined_call_operand.vmem [shape: bf16[3,4,32,8], index: 1, kind: input, shape index: {}]
  %s2 = inlined_call_operand.vmem [shape: f32[3,4,1,8], index: 2, kind: input, shape index: {}]
  %s3 = inlined_call_operand.vmem [shape: f32[2,1,8], index: 3, kind: input, shape index: {}]
  %s4 = inlined_call_operand.vmem [shape: bf16[2,4,8,8], index: 4, kind: output, shape index: {0}]
  %s5 = inlined_call_operand.hbm [shape: f32[2,4,8,8], index: 5, kind: output, shape index: {1}]
  %6 = xla_tuple %s4, %s5
  %s7 = sld [smem:[#allocation0]]
  $region132: #{bert_layer_forward.2} parent=0
    _
  %s9 = ssub.s32 1, %s7
  %s10 = scalar_select 0, %s9, %s7
  $region1: #{bert_layer_forward.2} parent=0
    #allocation2 [shape = 'u8[49152]{0}', space=vmem, size = 0xc000, scoped, tag = 'input window, operand 1']
    #allocation3 [shape = 'u8[3072]{0}', space=vmem, size = 0xc00, scoped, tag = 'input window, operand 2']
    #allocation4 [shape = 'u8[8192]{0}', space=vmem, size = 0x2000, scoped, tag = 'output window, operand 1']
    #allocation5 [shape = 's32[2]{0}', space=sflag, size = 0x8, scoped, tag = 'scoped memory for bert_layer_forward.2']
    %11 = vsyncpa [#allocation5], 0
    %s12 = scalar_lea.sflag [#allocation5], 1
    %13 = vsyncpa %s12, 0
    loop: start=0, step=1, limit=10
    $region2: #{bert_layer_forward.2} parent=1 // loop_pre_header
      _
    $region3: #{bert_layer_forward.2} parent=1 // loop_header
      %s15 = sphi 0, %s19
      %p16 = scmp.ge.s32.totalorder %s15, 10
      %s22 = sphi 0, %s34
      %s23 = sphi 0, %s30
      %s24 = sphi 0, %s22
      %s25 = sphi 0, %s23
      %s26 = sphi 0, %s24
      %s27 = sphi 0, %s25
      %s37 = sphi 0, %s39
      %s40 = sphi 0, %s37
      %s41 = sphi 0, %s40
      %s57 = sphi 0, %s41
      %s63 = sphi 0, %s65
      %s66 = sphi 0, %s63
      %s67 = sphi 0, %s66
      %s83 = sphi 0, %s67
      %s89 = sphi 0, %s91
      %s92 = sphi 0, %s89
      %s93 = sphi 0, %s92
      %s109 = sphi 0, %s93
      %s115 = sphi 0, %s117
      %s118 = sphi 0, %s115
      %s119 = sphi 0, %s118
      %s135 = sphi 0, %s119
      %s143 = sphi 0, %s145
      %s146 = sphi 0, %s143
      %s147 = sphi 0, %s146
      %s163 = sphi 0, %s147
      %s171 = sphi 0, %s173
      %s174 = sphi 0, %s171
      %s175 = sphi 0, %s174
      %s191 = sphi 0, %s175
    $region4: #{bert_layer_forward.2} parent=1 // loop_header_branch
      %18 = sbr.rel (%p16) target = $region8
    $region5: #{bert_layer_forward.2} parent=1 // loop_body
      %s20 = ssub.s32 %s15, 1
      %s21 = ssub.s32 %s15, 2
      %s28 = sadd.s32 1, %s23
      %p29 = scmp.ge.s32.totalorder %s28, 4
      %s30 = scalar_select %p29, 0, %s28
      %s31 = sadd.s32 1, %s22
      %s32 = scalar_select %p29, %s31, %s22
      %p33 = scmp.ge.s32.totalorder %s32, 2
      %s34 = scalar_select %p33, 0, %s32
      %s35 = ssub.s32 %s22, %s34
      %p36 = scmp.eq.s32.totalorder %s35, 0
      %s38 = sadd.s32 %s37, 1
      %s39 = scalar_select %p36, %s37, %s38
      %p42 = pneg %p36
      %p43 = scmp.eq.s32.totalorder %s15, 7
      %p44 = por %p42, %p43
      %p45 = scmp.ne.s32.totalorder %s37, %s40
      %p46 = scmp.eq.s32.totalorder %s15, 0
      %p47 = por %p45, %p46
      %p48 = scmp.ne.s32.totalorder %s37, %s40
      %p49 = scmp.eq.s32.totalorder %s20, 7
      %p50 = por %p48, %p49
      %p51 = scmp.ne.s32.totalorder %s40, %s41
      %p52 = scmp.eq.s32.totalorder %s20, 0
      %p53 = por %p51, %p52
      %p54 = scmp.ne.s32.totalorder %s40, %s41
      %p55 = scmp.eq.s32.totalorder %s21, 7
      %p56 = por %p54, %p55
      %p58 = scmp.ne.s32.totalorder %s41, %s57
      %p59 = scmp.eq.s32.totalorder %s21, 0
      %p60 = por %p58, %p59
      %s61 = ssub.s32 %s23, %s30
      %p62 = scmp.eq.s32.totalorder %s61, 0
      %s64 = sadd.s32 %s63, 1
      %s65 = scalar_select %p62, %s63, %s64
      %p68 = pneg %p62
      %p69 = scmp.eq.s32.totalorder %s15, 7
      %p70 = por %p68, %p69
      %p71 = scmp.ne.s32.totalorder %s63, %s66
      %p72 = scmp.eq.s32.totalorder %s15, 0
      %p73 = por %p71, %p72
      %p74 = scmp.ne.s32.totalorder %s63, %s66
      %p75 = scmp.eq.s32.totalorder %s20, 7
      %p76 = por %p74, %p75
      %p77 = scmp.ne.s32.totalorder %s66, %s67
      %p78 = scmp.eq.s32.totalorder %s20, 0
      %p79 = por %p77, %p78
      %p80 = scmp.ne.s32.totalorder %s66, %s67
      %p81 = scmp.eq.s32.totalorder %s21, 7
      %p82 = por %p80, %p81
      %p84 = scmp.ne.s32.totalorder %s67, %s83
      %p85 = scmp.eq.s32.totalorder %s21, 0
      %p86 = por %p84, %p85
      %s87 = ssub.s32 %s23, %s30
      %p88 = scmp.eq.s32.totalorder %s87, 0
      %s90 = sadd.s32 %s89, 1
      %s91 = scalar_select %p88, %s89, %s90
      %p94 = pneg %p88
      %p95 = scmp.eq.s32.totalorder %s15, 7
      %p96 = por %p94, %p95
      %p97 = scmp.ne.s32.totalorder %s89, %s92
      %p98 = scmp.eq.s32.totalorder %s15, 0
      %p99 = por %p97, %p98
      %p100 = scmp.ne.s32.totalorder %s89, %s92
      %p101 = scmp.eq.s32.totalorder %s20, 7
      %p102 = por %p100, %p101
      %p103 = scmp.ne.s32.totalorder %s92, %s93
      %p104 = scmp.eq.s32.totalorder %s20, 0
      %p105 = por %p103, %p104
      %p106 = scmp.ne.s32.totalorder %s92, %s93
      %p107 = scmp.eq.s32.totalorder %s21, 7
      %p108 = por %p106, %p107
      %p110 = scmp.ne.s32.totalorder %s93, %s109
      %p111 = scmp.eq.s32.totalorder %s21, 0
      %p112 = por %p110, %p111
      %s113 = ssub.s32 %s22, %s34
      %p114 = scmp.eq.s32.totalorder %s113, 0
      %s116 = sadd.s32 %s115, 1
      %s117 = scalar_select %p114, %s115, %s116
      %p120 = pneg %p114
      %p121 = scmp.eq.s32.totalorder %s15, 7
      %p122 = por %p120, %p121
      %p123 = scmp.ne.s32.totalorder %s115, %s118
      %p124 = scmp.eq.s32.totalorder %s15, 0
      %p125 = por %p123, %p124
      %p126 = scmp.ne.s32.totalorder %s115, %s118
      %p127 = scmp.eq.s32.totalorder %s20, 7
      %p128 = por %p126, %p127
      %p129 = scmp.ne.s32.totalorder %s118, %s119
      %p130 = scmp.eq.s32.totalorder %s20, 0
      %p131 = por %p129, %p130
      %p132 = scmp.ne.s32.totalorder %s118, %s119
      %p133 = scmp.eq.s32.totalorder %s21, 7
      %p134 = por %p132, %p133
      %p136 = scmp.ne.s32.totalorder %s119, %s135
      %p137 = scmp.eq.s32.totalorder %s21, 0
      %p138 = por %p136, %p137
      %s139 = ssub.s32 %s22, %s34
      %s140 = ssub.s32 %s23, %s30
      %s141 = sor.u32 %s139, %s140
      %p142 = scmp.eq.s32.totalorder %s141, 0
      %s144 = sadd.s32 %s143, 1
      %s145 = scalar_select %p142, %s143, %s144
      %p148 = pneg %p142
      %p149 = scmp.eq.s32.totalorder %s15, 7
      %p150 = por %p148, %p149
      %p151 = scmp.ne.s32.totalorder %s143, %s146
      %p152 = scmp.eq.s32.totalorder %s15, 0
      %p153 = por %p151, %p152
      %p154 = scmp.ne.s32.totalorder %s143, %s146
      %p155 = scmp.eq.s32.totalorder %s20, 7
      %p156 = por %p154, %p155
      %p157 = scmp.ne.s32.totalorder %s146, %s147
      %p158 = scmp.eq.s32.totalorder %s20, 0
      %p159 = por %p157, %p158
      %p160 = scmp.ne.s32.totalorder %s146, %s147
      %p161 = scmp.eq.s32.totalorder %s21, 7
      %p162 = por %p160, %p161
      %p164 = scmp.ne.s32.totalorder %s147, %s163
      %p165 = scmp.eq.s32.totalorder %s21, 0
      %p166 = por %p164, %p165
      %s167 = ssub.s32 %s22, %s34
      %s168 = ssub.s32 %s23, %s30
      %s169 = sor.u32 %s167, %s168
      %p170 = scmp.eq.s32.totalorder %s169, 0
      %s172 = sadd.s32 %s171, 1
      %s173 = scalar_select %p170, %s171, %s172
      %p176 = pneg %p170
      %p177 = scmp.eq.s32.totalorder %s15, 7
      %p178 = por %p176, %p177
      %p179 = scmp.ne.s32.totalorder %s171, %s174
      %p180 = scmp.eq.s32.totalorder %s15, 0
      %p181 = por %p179, %p180
      %p182 = scmp.ne.s32.totalorder %s171, %s174
      %p183 = scmp.eq.s32.totalorder %s20, 7
      %p184 = por %p182, %p183
      %p185 = scmp.ne.s32.totalorder %s174, %s175
      %p186 = scmp.eq.s32.totalorder %s20, 0
      %p187 = por %p185, %p186
      %p188 = scmp.ne.s32.totalorder %s174, %s175
      %p189 = scmp.eq.s32.totalorder %s21, 7
      %p190 = por %p188, %p189
      %p192 = scmp.ne.s32.totalorder %s175, %s191
      %p193 = scmp.eq.s32.totalorder %s21, 0
      %p194 = por %p192, %p193
      %p195 = scmp.le.s32.totalorder 1, %s15
      %p196 = scmp.lt.s32.totalorder %s15, 9
      %p197 = pnand %p195, %p196
      %p198 = pneg %p197
      // Predicated region
      $region9: #{bert_layer_forward.2} parent=5 // pred_check
        _
      $region10: #{bert_layer_forward.2} parent=5 // pred_check_branch
        %200 = sbr.rel (%p197) target = $region12
      $region11: #{bert_layer_forward.2} parent=5 // pred_region
        %s201 = ssub.s32 %s15, 1
      $region12: #{bert_layer_forward.2} parent=5 // pred_fallthru
        _
      %p202 = scmp.lt.s32.totalorder %s15, 8
      // Predicated region
      $region13: #{bert_layer_forward.2} parent=5 // pred_check
        %p203 = pneg %p202
      $region14: #{bert_layer_forward.2} parent=5 // pred_check_branch
        %205 = sbr.rel (%p203) target = $region16
      $region15: #{bert_layer_forward.2} parent=5 // pred_region
        // Predicated region
        $region17: #{bert_layer_forward.2} parent=15 // pred_check
          %p206 = pneg %p47
        $region18: #{bert_layer_forward.2} parent=15 // pred_check_branch
          %208 = sbr.rel (%p206) target = $region20
        $region19: #{bert_layer_forward.2} parent=15 // pred_region
          %p209 = scmp.lt.s32.totalorder %s22, 1
          %s210 = scalar_select %p209, %s22, 1
          %s211 = smul.addr %s210, 8
          %s212 = scalar_lea.vmem %s0, %s211
        $region20: #{bert_layer_forward.2} parent=15 // pred_fallthru
          _
        // Predicated region
        $region21: #{bert_layer_forward.2} parent=15 // pred_check
          %p213 = pneg %p73
        $region22: #{bert_layer_forward.2} parent=15 // pred_check_branch
          %215 = sbr.rel (%p213) target = $region24
        $region23: #{bert_layer_forward.2} parent=15 // pred_region
          %s216 = sand.u32 %s63, 1
          %s217 = sand.u32 %s63, 1
          %s218 = smul.addr %s217, 48
          %s219 = scalar_lea.vmem [#allocation2], %s218
          %s220 = smul.addr %s23, 4
          %s221 = smul.addr %s220, 4
          %s222 = scalar_lea.vmem %s1, %s221
          // Predicated region
          $region25: #{bert_layer_forward.2} parent=23 // pred_check
            _
          $region26: #{bert_layer_forward.2} parent=23 // pred_check_branch
            %224 = sbr.rel (0) target = $region28
          $region27: #{bert_layer_forward.2} parent=23 // pred_region
            // Predicated region
            $region29: #{bert_layer_forward.2} parent=27 // pred_check
              _
            $region30: #{bert_layer_forward.2} parent=27 // pred_check_branch
              %226 = sbr.rel target = $region32
            $region31: #{bert_layer_forward.2} parent=27 // pred_region
              // Predicated region
              $region44: #{bert_layer_forward.2} parent=31 // pred_check
                _
              $region45: #{bert_layer_forward.2} parent=31 // pred_check_branch
                %263 = sbr.rel (0) target = $region47
              $region46: #{bert_layer_forward.2} parent=31 // pred_region
                loop: start=0, step=1, limit=1
                $region48: #{bert_layer_forward.2} parent=46 // loop_pre_header
                  _
                $region49: #{bert_layer_forward.2} parent=46 // loop_header
                  %s265 = sphi 0, %s269
                  %p266 = scmp.ge.s32.totalorder %s265, 1
                  %s270 = sphi %s222, %s222
                  %s271 = sphi %s219, %s219
                $region50: #{bert_layer_forward.2} parent=46 // loop_header_branch
                  %268 = sbr.rel (%p266) target = $region54
                $region51: #{bert_layer_forward.2} parent=46 // loop_body
                  _
                $region52: #{bert_layer_forward.2} parent=46 // loop_footer
                  %s269 = sadd.s32 1, %s265
                $region53: #{bert_layer_forward.2} parent=46 // loop_footer_branch
                  %264 = sbr.rel target = $region49
                $region54: #{bert_layer_forward.2} parent=46 // loop_exit
                  _
                loop: start=0, step=1, limit=1
                $region55: #{bert_layer_forward.2} parent=46 // loop_pre_header
                  _
                $region56: #{bert_layer_forward.2} parent=46 // loop_header
                  %s274 = sphi 0, %s278
                  %p275 = scmp.ge.s32.totalorder %s274, 1
                  %s279 = sphi %s222, %s222
                  %s280 = sphi %s219, %s219
                $region57: #{bert_layer_forward.2} parent=46 // loop_header_branch
                  %277 = sbr.rel (%p275) target = $region61
                $region58: #{bert_layer_forward.2} parent=46 // loop_body
                  %v281 = vld [vmem:[%s279] sm:$0xf]
                  %282 = vst [vmem:[%s280] sm:$0xf] %v281
                  %v283 = vld [vmem:[%s279 + $0x4] sm:$0xf]
                  %284 = vst [vmem:[%s280 + $0x4] sm:$0xf] %v283
                  %v285 = vld [vmem:[%s279 + $0x8] sm:$0xf]
                  %286 = vst [vmem:[%s280 + $0x8] sm:$0xf] %v285
                  %v287 = vld [vmem:[%s279 + $0xc] sm:$0xf]
                  %288 = vst [vmem:[%s280 + $0xc] sm:$0xf] %v287
                  %v289 = vld [vmem:[%s279 + $0x40] sm:$0xf]
                  %290 = vst [vmem:[%s280 + $0x10] sm:$0xf] %v289
                  %v291 = vld [vmem:[%s279 + $0x44] sm:$0xf]
                  %292 = vst [vmem:[%s280 + $0x14] sm:$0xf] %v291
                  %v293 = vld [vmem:[%s279 + $0x48] sm:$0xf]
                  %294 = vst [vmem:[%s280 + $0x18] sm:$0xf] %v293
                  %v295 = vld [vmem:[%s279 + $0x4c] sm:$0xf]
                  %296 = vst [vmem:[%s280 + $0x1c] sm:$0xf] %v295
                  %v297 = vld [vmem:[%s279 + $0x80] sm:$0xf]
                  %298 = vst [vmem:[%s280 + $0x20] sm:$0xf] %v297
                  %v299 = vld [vmem:[%s279 + $0x84] sm:$0xf]
                  %300 = vst [vmem:[%s280 + $0x24] sm:$0xf] %v299
                  %v301 = vld [vmem:[%s279 + $0x88] sm:$0xf]
                  %302 = vst [vmem:[%s280 + $0x28] sm:$0xf] %v301
                  %v303 = vld [vmem:[%s279 + $0x8c] sm:$0xf]
                  %304 = vst [vmem:[%s280 + $0x2c] sm:$0xf] %v303
                $region59: #{bert_layer_forward.2} parent=46 // loop_footer
                  %s278 = sadd.s32 1, %s274
                $region60: #{bert_layer_forward.2} parent=46 // loop_footer_branch
                  %273 = sbr.rel target = $region56
                $region61: #{bert_layer_forward.2} parent=46 // loop_exit
                  _
              $region47: #{bert_layer_forward.2} parent=31 // pred_fallthru
                _
            $region32: #{bert_layer_forward.2} parent=27 // pred_fallthru
              _
            // Predicated region
            $region33: #{bert_layer_forward.2} parent=27 // pred_check
              _
            $region34: #{bert_layer_forward.2} parent=27 // pred_check_branch
              %228 = sbr.rel (0) target = $region36
            $region35: #{bert_layer_forward.2} parent=27 // pred_region
              loop: start=0, step=1, limit=1
              $region37: #{bert_layer_forward.2} parent=35 // loop_pre_header
                _
              $region38: #{bert_layer_forward.2} parent=35 // loop_header
                %s231 = sphi 0, %s235
                %p232 = scmp.ge.s32.totalorder %s231, 1
                %s236 = sphi %s222, %s222
                %s237 = sphi %s219, %s219
              $region39: #{bert_layer_forward.2} parent=35 // loop_header_branch
                %234 = sbr.rel (%p232) target = $region43
              $region40: #{bert_layer_forward.2} parent=35 // loop_body
                %v238 = vld [vmem:[%s236] sm:$0xf]
                %239 = vst [vmem:[%s237] sm:$0xf] %v238
                %v240 = vld [vmem:[%s236 + $0x4] sm:$0xf]
                %241 = vst [vmem:[%s237 + $0x4] sm:$0xf] %v240
                %v242 = vld [vmem:[%s236 + $0x8] sm:$0xf]
                %243 = vst [vmem:[%s237 + $0x8] sm:$0xf] %v242
                %v244 = vld [vmem:[%s236 + $0xc] sm:$0xf]
                %245 = vst [vmem:[%s237 + $0xc] sm:$0xf] %v244
                %v246 = vld [vmem:[%s236 + $0x40] sm:$0xf]
                %247 = vst [vmem:[%s237 + $0x10] sm:$0xf] %v246
                %v248 = vld [vmem:[%s236 + $0x44] sm:$0xf]
                %249 = vst [vmem:[%s237 + $0x14] sm:$0xf] %v248
                %v250 = vld [vmem:[%s236 + $0x48] sm:$0xf]
                %251 = vst [vmem:[%s237 + $0x18] sm:$0xf] %v250
                %v252 = vld [vmem:[%s236 + $0x4c] sm:$0xf]
                %253 = vst [vmem:[%s237 + $0x1c] sm:$0xf] %v252
                %v254 = vld [vmem:[%s236 + $0x80] sm:$0xf]
                %255 = vst [vmem:[%s237 + $0x20] sm:$0xf] %v254
                %v256 = vld [vmem:[%s236 + $0x84] sm:$0xf]
                %257 = vst [vmem:[%s237 + $0x24] sm:$0xf] %v256
                %v258 = vld [vmem:[%s236 + $0x88] sm:$0xf]
                %259 = vst [vmem:[%s237 + $0x28] sm:$0xf] %v258
                %v260 = vld [vmem:[%s236 + $0x8c] sm:$0xf]
                %261 = vst [vmem:[%s237 + $0x2c] sm:$0xf] %v260
              $region41: #{bert_layer_forward.2} parent=35 // loop_footer
                %s235 = sadd.s32 1, %s231
              $region42: #{bert_layer_forward.2} parent=35 // loop_footer_branch
                %230 = sbr.rel target = $region38
              $region43: #{bert_layer_forward.2} parent=35 // loop_exit
                _
            $region36: #{bert_layer_forward.2} parent=27 // pred_fallthru
              _
          $region28: #{bert_layer_forward.2} parent=23 // pred_fallthru
            _
          %305 = vnop
        $region24: #{bert_layer_forward.2} parent=15 // pred_fallthru
          _
        // Predicated region
        $region62: #{bert_layer_forward.2} parent=15 // pred_check
          %p306 = pneg %p99
        $region63: #{bert_layer_forward.2} parent=15 // pred_check_branch
          %308 = sbr.rel (%p306) target = $region65
        $region64: #{bert_layer_forward.2} parent=15 // pred_region
          %s309 = sand.u32 %s89, 1
          %s310 = sand.u32 %s89, 1
          %s311 = smul.addr %s310, 3
          %s312 = scalar_lea.vmem [#allocation3], %s311
          %s313 = scalar_lea.vmem %s2, %s23
          // Predicated region
          $region66: #{bert_layer_forward.2} parent=64 // pred_check
            _
          $region67: #{bert_layer_forward.2} parent=64 // pred_check_branch
            %315 = sbr.rel (0) target = $region69
          $region68: #{bert_layer_forward.2} parent=64 // pred_region
            // Predicated region
            $region70: #{bert_layer_forward.2} parent=68 // pred_check
              _
            $region71: #{bert_layer_forward.2} parent=68 // pred_check_branch
              %317 = sbr.rel target = $region73
            $region72: #{bert_layer_forward.2} parent=68 // pred_region
              // Predicated region
              $region85: #{bert_layer_forward.2} parent=72 // pred_check
                _
              $region86: #{bert_layer_forward.2} parent=72 // pred_check_branch
                %336 = sbr.rel (0) target = $region88
              $region87: #{bert_layer_forward.2} parent=72 // pred_region
                loop: start=0, step=1, limit=1
                $region89: #{bert_layer_forward.2} parent=87 // loop_pre_header
                  _
                $region90: #{bert_layer_forward.2} parent=87 // loop_header
                  %s339 = sphi 0, %s343
                  %p340 = scmp.ge.s32.totalorder %s339, 1
                  %s344 = sphi %s313, %s313
                  %s345 = sphi %s312, %s312
                $region91: #{bert_layer_forward.2} parent=87 // loop_header_branch
                  %342 = sbr.rel (%p340) target = $region95
                $region92: #{bert_layer_forward.2} parent=87 // loop_body
                  %v346 = vld [vmem:[%s344] sm:$0x1]
                  %347 = vst [vmem:[%s345] sm:$0x1] %v346
                  %v348 = vld [vmem:[%s344 + $0x4] sm:$0x1]
                  %349 = vst [vmem:[%s345 + $0x1] sm:$0x1] %v348
                  %v350 = vld [vmem:[%s344 + $0x8] sm:$0x1]
                  %351 = vst [vmem:[%s345 + $0x2] sm:$0x1] %v350
                $region93: #{bert_layer_forward.2} parent=87 // loop_footer
                  %s343 = sadd.s32 1, %s339
                $region94: #{bert_layer_forward.2} parent=87 // loop_footer_branch
                  %338 = sbr.rel target = $region90
                $region95: #{bert_layer_forward.2} parent=87 // loop_exit
                  _
              $region88: #{bert_layer_forward.2} parent=72 // pred_fallthru
                _
            $region73: #{bert_layer_forward.2} parent=68 // pred_fallthru
              _
            // Predicated region
            $region74: #{bert_layer_forward.2} parent=68 // pred_check
              _
            $region75: #{bert_layer_forward.2} parent=68 // pred_check_branch
              %319 = sbr.rel (0) target = $region77
            $region76: #{bert_layer_forward.2} parent=68 // pred_region
              loop: start=0, step=1, limit=1
              $region78: #{bert_layer_forward.2} parent=76 // loop_pre_header
                _
              $region79: #{bert_layer_forward.2} parent=76 // loop_header
                %s322 = sphi 0, %s326
                %p323 = scmp.ge.s32.totalorder %s322, 1
                %s327 = sphi %s313, %s313
                %s328 = sphi %s312, %s312
              $region80: #{bert_layer_forward.2} parent=76 // loop_header_branch
                %325 = sbr.rel (%p323) target = $region84
              $region81: #{bert_layer_forward.2} parent=76 // loop_body
                %v329 = vld [vmem:[%s327] sm:$0x1]
                %330 = vst [vmem:[%s328] sm:$0x1] %v329
                %v331 = vld [vmem:[%s327 + $0x4] sm:$0x1]
                %332 = vst [vmem:[%s328 + $0x1] sm:$0x1] %v331
                %v333 = vld [vmem:[%s327 + $0x8] sm:$0x1]
                %334 = vst [vmem:[%s328 + $0x2] sm:$0x1] %v333
              $region82: #{bert_layer_forward.2} parent=76 // loop_footer
                %s326 = sadd.s32 1, %s322
              $region83: #{bert_layer_forward.2} parent=76 // loop_footer_branch
                %321 = sbr.rel target = $region79
              $region84: #{bert_layer_forward.2} parent=76 // loop_exit
                _
            $region77: #{bert_layer_forward.2} parent=68 // pred_fallthru
              _
          $region69: #{bert_layer_forward.2} parent=64 // pred_fallthru
            _
          %352 = vnop
        $region65: #{bert_layer_forward.2} parent=15 // pred_fallthru
          _
        // Predicated region
        $region96: #{bert_layer_forward.2} parent=15 // pred_check
          %p353 = pneg %p125
        $region97: #{bert_layer_forward.2} parent=15 // pred_check_branch
          %355 = sbr.rel (%p353) target = $region99
        $region98: #{bert_layer_forward.2} parent=15 // pred_region
          %p356 = scmp.lt.s32.totalorder %s22, 1
          %s357 = scalar_select %p356, %s22, 1
          %s358 = scalar_lea.vmem %s3, %s357
        $region99: #{bert_layer_forward.2} parent=15 // pred_fallthru
          _
      $region16: #{bert_layer_forward.2} parent=5 // pred_fallthru
        _
      %p359 = scmp.le.s32.totalorder 1, %s15
      %p360 = scmp.lt.s32.totalorder %s15, 9
      %p361 = pnand %p359, %p360
      %p362 = pneg %p361
      // Predicated region
      $region100: #{bert_layer_forward.2} parent=5 // pred_check
        _
      $region101: #{bert_layer_forward.2} parent=5 // pred_check_branch
        %364 = sbr.rel (%p361) target = $region103
      $region102: #{bert_layer_forward.2} parent=5 // pred_region
        %s365 = ssub.s32 %s15, 1
        %s366 = sand.u32 %s66, 1
        %s367 = sand.u32 %s66, 1
        %s368 = smul.addr %s367, 48
        %s369 = scalar_lea.vmem [#allocation2], %s368
        // Predicated region
        $region104: #{bert_layer_forward.2} parent=102 // pred_check
          %p370 = pneg %p79
        $region105: #{bert_layer_forward.2} parent=102 // pred_check_branch
          %372 = sbr.rel (%p370) target = $region107
        $region106: #{bert_layer_forward.2} parent=102 // pred_region
          _
        $region107: #{bert_layer_forward.2} parent=102 // pred_fallthru
          _
        %s373 = sand.u32 %s92, 1
        %s374 = sand.u32 %s92, 1
        %s375 = smul.addr %s374, 3
        %s376 = scalar_lea.vmem [#allocation3], %s375
        // Predicated region
        $region108: #{bert_layer_forward.2} parent=102 // pred_check
          %p377 = pneg %p105
        $region109: #{bert_layer_forward.2} parent=102 // pred_check_branch
          %379 = sbr.rel (%p377) target = $region111
        $region110: #{bert_layer_forward.2} parent=102 // pred_region
          _
        $region111: #{bert_layer_forward.2} parent=102 // pred_fallthru
          _
        %p380 = scmp.lt.s32.totalorder %s24, 1
        %s381 = scalar_select %p380, %s24, 1
        %s382 = smul.addr %s381, 8
        %s383 = scalar_lea.vmem %s0, %s382
        %p384 = pneg %p53
        %p385 = pneg %p50
        %s386 = sand.u32 %s66, 1
        %s387 = sand.u32 %s66, 1
        %s388 = smul.addr %s387, 48
        %s389 = scalar_lea.vmem [#allocation2], %s388
        %p390 = pneg %p79
        %p391 = pneg %p76
        %s392 = sand.u32 %s92, 1
        %s393 = sand.u32 %s92, 1
        %s394 = smul.addr %s393, 3
        %s395 = scalar_lea.vmem [#allocation3], %s394
        %p396 = pneg %p105
        %p397 = pneg %p102
        %p398 = scmp.lt.s32.totalorder %s24, 1
        %s399 = scalar_select %p398, %s24, 1
        %s400 = scalar_lea.vmem %s3, %s399
        %p401 = pneg %p131
        %p402 = pneg %p128
        %p403 = pneg %p159
        %p404 = pneg %p156
        %p405 = scmp.lt.s32.totalorder %s24, 1
        %s406 = scalar_select %p405, %s24, 1
        %p407 = scmp.lt.s32.totalorder %s25, 3
        %s408 = scalar_select %p407, %s25, 3
        %s409 = smul.addr %s406, 4
        %s410 = sadd.s32 %s408, %s409
        %s411 = smul.addr %s410, 4
        %s412 = scalar_lea.vmem %s4, %s411
        %p413 = pneg %p187
        %p414 = pneg %p184
        %s415 = sand.u32 %s174, 1
        %s416 = scalar_lea.sflag [#allocation5], %s415
        %s417 = sand.u32 %s174, 1
        %s418 = smul.addr %s417, 8
        %s419 = scalar_lea.vmem [#allocation4], %s418
        %p420 = scmp.lt.s32.totalorder %s24, 1
        %s421 = scalar_select %p420, %s24, 1
        %s422 = smul.addr %s421, 8
        %s423 = scalar_lea.vmem %s0, %s422
        %p424 = scmp.lt.s32.totalorder %s24, 1
        %s425 = scalar_select %p424, %s24, 1
        %s426 = scalar_lea.vmem %s3, %s425
        %p427 = scmp.lt.s32.totalorder %s24, 1
        %s428 = scalar_select %p427, %s24, 1
        %p429 = scmp.lt.s32.totalorder %s25, 3
        %s430 = scalar_select %p429, %s25, 3
        %s431 = smul.addr %s428, 4
        %s432 = sadd.s32 %s430, %s431
        %s433 = smul.addr %s432, 4
        %s434 = scalar_lea.vmem %s4, %s433
        %v436 = vld [vmem:[%s423] sm:$0xff]
        %v437 = vpack.c.bf16 %v436, %v436
        %v438 = vld [vmem:[%s369] sm:$0xf]
        %v439 = vld [vmem:[%s369 + $0x4] sm:$0xf]
        %v440 = vld [vmem:[%s369 + $0x8] sm:$0xf]
        %v441 = vld [vmem:[%s369 + $0xc] sm:$0xf]
        %v442 = vld [vmem:[%s376] sm:$0x1]
        %v444 = vlaneseq
        %v445 = vshrl.u32 %v444, 7
        %v446 = vsub.s32 0, %v445
        %v447 = vrot.slane %v442, %v446
        %v453 = vunpack.c.l.b16 %v438
        %v454 = vunpack.c.l.b16 %v439
        %v455 = vunpack.c.l.b16 %v440
        %v456 = vunpack.c.l.b16 %v441
        %v457 = vpack.c.b16 %v454, %v453
        %v458 = vpack.c.b16 %v456, %v455
        %vm461 = vcmask 261120
        %v463 = vsel %vm461, %v437, 0
        %465 = vmatprep.subr.bf16.mxu0 0
        %466 = vmatpush1.bf16.msra.mxu0 %v457
        %467 = vmatprep.subr.bf16.mxu0 0
        %468 = vmatpush1.bf16.msra.mxu0 %v458
        %469 = vmatprep.subr.bf16.mxu0 0
        %470 = vmatpush1.bf16.msra.mxu0 0
        %471 = vmatprep.subr.bf16.mxu0 0
        %472 = vmatpush1.bf16.msra.mxu0 0
        %473 = vmatprep.subr.bf16.mxu0 0
        %474 = vmatpush1.bf16.msra.mxu0 0
        %475 = vmatprep.subr.bf16.mxu0 0
        %476 = vmatpush1.bf16.msra.mxu0 0
        %477 = vmatprep.subr.bf16.mxu0 0
        %478 = vmatpush1.bf16.msra.mxu0 0
        %479 = vmatprep.subr.bf16.mxu0 0
        %480 = vmatpush1.bf16.msra.mxu0 0
        %481 = vmatprep.subr.bf16.mxu0 0
        %482 = vmatpush1.bf16.msra.mxu0 0
        %483 = vmatprep.subr.bf16.mxu0 0
        %484 = vmatpush1.bf16.msra.mxu0 0
        %485 = vmatprep.subr.bf16.mxu0 0
        %486 = vmatpush1.bf16.msra.mxu0 0
        %487 = vmatprep.subr.bf16.mxu0 0
        %488 = vmatpush1.bf16.msra.mxu0 0
        %489 = vmatprep.subr.bf16.mxu0 0
        %490 = vmatpush1.bf16.msra.mxu0 0
        %491 = vmatprep.subr.bf16.mxu0 0
        %492 = vmatpush1.bf16.msra.mxu0 0
        %493 = vmatprep.subr.bf16.mxu0 0
        %494 = vmatpush1.bf16.msra.mxu0 0
        %495 = vmatprep.subr.bf16.mxu0 0
        %496 = vmatpush1.bf16.msra.mxu0 0
        %497 = vmatprep.mubr.bf16.mxu0 0
        %498 = vmatmul.mubr.bf16.gmra.mrb[0].mxu0 %v463
        %v499 = vpop.f32.mrb[0].mxu0
        %v500 = vadd.f32 %v447, %v499
        %v501 = vpop.f32.mrb[0].mxu0
        %v502 = vpop.f32.mrb[0].mxu0
        %v503 = vpop.f32.mrb[0].mxu0
        %504 = vdwg.mxu0
        %s505 = scalar_lea.vmem %s369, 16 [#allocation2]
        %v506 = vld [vmem:[%s505] sm:$0xf]
        %v507 = vld [vmem:[%s505 + $0x4] sm:$0xf]
        %v508 = vld [vmem:[%s505 + $0x8] sm:$0xf]
        %v509 = vld [vmem:[%s505 + $0xc] sm:$0xf]
        %s510 = scalar_lea.vmem %s376, 1 [#allocation3]
        %v511 = vld [vmem:[%s510] sm:$0x1]
        %v513 = vlaneseq
        %v514 = vshrl.u32 %v513, 7
        %v515 = vsub.s32 0, %v514
        %v516 = vrot.slane %v511, %v515
        %v522 = vunpack.c.l.b16 %v506
        %v523 = vunpack.c.l.b16 %v507
        %v524 = vunpack.c.l.b16 %v508
        %v525 = vunpack.c.l.b16 %v509
        %v526 = vpack.c.b16 %v523, %v522
        %v527 = vpack.c.b16 %v525, %v524
        %530 = vmatprep.subr.bf16.mxu0 0
        %531 = vmatpush1.bf16.msra.mxu0 %v526
        %532 = vmatprep.subr.bf16.mxu0 0
        %533 = vmatpush1.bf16.msra.mxu0 %v527
        %534 = vmatprep.subr.bf16.mxu0 0
        %535 = vmatpush1.bf16.msra.mxu0 0
        %536 = vmatprep.subr.bf16.mxu0 0
        %537 = vmatpush1.bf16.msra.mxu0 0
        %538 = vmatprep.subr.bf16.mxu0 0
        %539 = vmatpush1.bf16.msra.mxu0 0
        %540 = vmatprep.subr.bf16.mxu0 0
        %541 = vmatpush1.bf16.msra.mxu0 0
        %542 = vmatprep.subr.bf16.mxu0 0
        %543 = vmatpush1.bf16.msra.mxu0 0
        %544 = vmatprep.subr.bf16.mxu0 0
        %545 = vmatpush1.bf16.msra.mxu0 0
        %546 = vmatprep.subr.bf16.mxu0 0
        %547 = vmatpush1.bf16.msra.mxu0 0
        %548 = vmatprep.subr.bf16.mxu0 0
        %549 = vmatpush1.bf16.msra.mxu0 0
        %550 = vmatprep.subr.bf16.mxu0 0
        %551 = vmatpush1.bf16.msra.mxu0 0
        %552 = vmatprep.subr.bf16.mxu0 0
        %553 = vmatpush1.bf16.msra.mxu0 0
        %554 = vmatprep.subr.bf16.mxu0 0
        %555 = vmatpush1.bf16.msra.mxu0 0
        %556 = vmatprep.subr.bf16.mxu0 0
        %557 = vmatpush1.bf16.msra.mxu0 0
        %558 = vmatprep.subr.bf16.mxu0 0
        %559 = vmatpush1.bf16.msra.mxu0 0
        %560 = vmatprep.subr.bf16.mxu0 0
        %561 = vmatpush1.bf16.msra.mxu0 0
        %562 = vmatprep.mubr.bf16.mxu0 0
        %563 = vmatmul.mubr.bf16.gmra.mrb[0].mxu0 %v463
        %v564 = vpop.f32.mrb[0].mxu0
        %v565 = vadd.f32 %v516, %v564
        %v566 = vpop.f32.mrb[0].mxu0
        %v567 = vpop.f32.mrb[0].mxu0
        %v568 = vpop.f32.mrb[0].mxu0
        %569 = vdwg.mxu0
        %s570 = scalar_lea.vmem %s369, 32 [#allocation2]
        %v571 = vld [vmem:[%s570] sm:$0xf]
        %v572 = vld [vmem:[%s570 + $0x4] sm:$0xf]
        %v573 = vld [vmem:[%s570 + $0x8] sm:$0xf]
        %v574 = vld [vmem:[%s570 + $0xc] sm:$0xf]
        %s575 = scalar_lea.vmem %s376, 2 [#allocation3]
        %v576 = vld [vmem:[%s575] sm:$0x1]
        %v578 = vlaneseq
        %v579 = vshrl.u32 %v578, 7
        %v580 = vsub.s32 0, %v579
        %v581 = vrot.slane %v576, %v580
        %v587 = vunpack.c.l.b16 %v571
        %v588 = vunpack.c.l.b16 %v572
        %v589 = vunpack.c.l.b16 %v573
        %v590 = vunpack.c.l.b16 %v574
        %v591 = vpack.c.b16 %v588, %v587
        %v592 = vpack.c.b16 %v590, %v589
        %595 = vmatprep.subr.bf16.mxu0 0
        %596 = vmatpush1.bf16.msra.mxu0 %v591
        %597 = vmatprep.subr.bf16.mxu0 0
        %598 = vmatpush1.bf16.msra.mxu0 %v592
        %599 = vmatprep.subr.bf16.mxu0 0
        %600 = vmatpush1.bf16.msra.mxu0 0
        %601 = vmatprep.subr.bf16.mxu0 0
        %602 = vmatpush1.bf16.msra.mxu0 0
        %603 = vmatprep.subr.bf16.mxu0 0
        %604 = vmatpush1.bf16.msra.mxu0 0
        %605 = vmatprep.subr.bf16.mxu0 0
        %606 = vmatpush1.bf16.msra.mxu0 0
        %607 = vmatprep.subr.bf16.mxu0 0
        %608 = vmatpush1.bf16.msra.mxu0 0
        %609 = vmatprep.subr.bf16.mxu0 0
        %610 = vmatpush1.bf16.msra.mxu0 0
        %611 = vmatprep.subr.bf16.mxu0 0
        %612 = vmatpush1.bf16.msra.mxu0 0
        %613 = vmatprep.subr.bf16.mxu0 0
        %614 = vmatpush1.bf16.msra.mxu0 0
        %615 = vmatprep.subr.bf16.mxu0 0
        %616 = vmatpush1.bf16.msra.mxu0 0
        %617 = vmatprep.subr.bf16.mxu0 0
        %618 = vmatpush1.bf16.msra.mxu0 0
        %619 = vmatprep.subr.bf16.mxu0 0
        %620 = vmatpush1.bf16.msra.mxu0 0
        %621 = vmatprep.subr.bf16.mxu0 0
        %622 = vmatpush1.bf16.msra.mxu0 0
        %623 = vmatprep.subr.bf16.mxu0 0
        %624 = vmatpush1.bf16.msra.mxu0 0
        %625 = vmatprep.subr.bf16.mxu0 0
        %626 = vmatpush1.bf16.msra.mxu0 0
        %627 = vmatprep.mubr.bf16.mxu0 0
        %628 = vmatmul.mubr.bf16.gmra.mrb[0].mxu0 %v463
        %v629 = vpop.f32.mrb[0].mxu0
        %v630 = vadd.f32 %v581, %v629
        %v631 = vpop.f32.mrb[0].mxu0
        %v632 = vpop.f32.mrb[0].mxu0
        %v633 = vpop.f32.mrb[0].mxu0
        %634 = vdwg.mxu0
        %v635 = vmul.f32 %v500, 0.35355338
        %v636 = vpack.c.bf16 %v635, %v635
        %v637 = vpack.c.bf16 %v565, %v565
        %v638 = vld [vmem:[%s426] sm:$0x1]
        %v640 = vlaneseq
        %v641 = vshrl.u32 %v640, 7
        %v642 = vsub.s32 0, %v641
        %v643 = vrot.slane %v638, %v642
        %vm645 = vcmask 64512
        %v647 = vsel %vm645, %v636, 0
        %v650 = vsel %vm645, %v637, 0
        %652 = vmatprep.subr.bf16.mxu0 0
        %653 = vmatpush1.bf16.xpose.msra.mxu0 %v650
        %654 = vmatprep.subr.bf16.mxu0 0
        %655 = vmatpush1.bf16.xpose.msra.mxu0 0
        %656 = vmatprep.subr.bf16.mxu0 0
        %657 = vmatpush1.bf16.xpose.msra.mxu0 0
        %658 = vmatprep.subr.bf16.mxu0 0
        %659 = vmatpush1.bf16.xpose.msra.mxu0 0
        %660 = vmatprep.subr.bf16.mxu0 0
        %661 = vmatpush1.bf16.xpose.msra.mxu0 0
        %662 = vmatprep.subr.bf16.mxu0 0
        %663 = vmatpush1.bf16.xpose.msra.mxu0 0
        %664 = vmatprep.subr.bf16.mxu0 0
        %665 = vmatpush1.bf16.xpose.msra.mxu0 0
        %666 = vmatprep.subr.bf16.mxu0 0
        %667 = vmatpush1.bf16.xpose.msra.mxu0 0
        %668 = vmatprep.subr.bf16.mxu0 0
        %669 = vmatpush1.bf16.xpose.msra.mxu0 0
        %670 = vmatprep.subr.bf16.mxu0 0
        %671 = vmatpush1.bf16.xpose.msra.mxu0 0
        %672 = vmatprep.subr.bf16.mxu0 0
        %673 = vmatpush1.bf16.xpose.msra.mxu0 0
        %674 = vmatprep.subr.bf16.mxu0 0
        %675 = vmatpush1.bf16.xpose.msra.mxu0 0
        %676 = vmatprep.subr.bf16.mxu0 0
        %677 = vmatpush1.bf16.xpose.msra.mxu0 0
        %678 = vmatprep.subr.bf16.mxu0 0
        %679 = vmatpush1.bf16.xpose.msra.mxu0 0
        %680 = vmatprep.subr.bf16.mxu0 0
        %681 = vmatpush1.bf16.xpose.msra.mxu0 0
        %682 = vmatprep.subr.bf16.mxu0 0
        %683 = vmatpush1.bf16.xpose.msra.mxu0 0
        %684 = vmatprep.mubr.bf16.mxu0 0
        %685 = vmatmul.mubr.bf16.gmra.mrb[0].mxu0 %v647
        %v686 = vpop.f32.mrb[0].mxu0
        %v687 = vadd.f32 %v643, %v686
        %v688 = vpop.f32.mrb[0].mxu0
        %v689 = vpop.f32.mrb[0].mxu0
        %v690 = vpop.f32.mrb[0].mxu0
        %691 = vdwg.mxu0
        %v692 = vsel %vm645, %v687, -inf
        %693 = vmax.xlane.f32.xlu0 %v692
        %v694 = vpop.xlane.xlu0 %693
        %v695 = vsub.f32 %v687, %v694
        %v696 = vmul.f32 %v695, 1.442695
        %v697 = vpow.pop %v696
        %v698 = vsel %vm645, %v697, 0.0
        %699 = vadd.xlane.f32.xlu0 %v698
        %v700 = vpop.xlane.xlu0 %699
        %v701 = vrcp.pop %v700
        %v702 = vmul.f32 %v697, %v701
        %703 = vst.msk [vmem:[%s419] sm:$0xff] %vm645, %v702
        %v704 = vpack.c.bf16 %v702, %v702
        %v705 = vpack.c.bf16 %v630, %v630
        %v707 = vsel %vm645, %v704, 0
        %vm709 = vcmask 1043456
        %v711 = vsel %vm709, %v705, 0
        %713 = vmatprep.subr.bf16.mxu0 0
        %714 = vmatpush1.bf16.msra.mxu0 %v711
        %715 = vmatprep.subr.bf16.mxu0 0
        %716 = vmatpush1.bf16.msra.mxu0 0
        %717 = vmatprep.subr.bf16.mxu0 0
        %718 = vmatpush1.bf16.msra.mxu0 0
        %719 = vmatprep.subr.bf16.mxu0 0
        %720 = vmatpush1.bf16.msra.mxu0 0
        %721 = vmatprep.subr.bf16.mxu0 0
        %722 = vmatpush1.bf16.msra.mxu0 0
        %723 = vmatprep.subr.bf16.mxu0 0
        %724 = vmatpush1.bf16.msra.mxu0 0
        %725 = vmatprep.subr.bf16.mxu0 0
        %726 = vmatpush1.bf16.msra.mxu0 0
        %727 = vmatprep.subr.bf16.mxu0 0
        %728 = vmatpush1.bf16.msra.mxu0 0
        %729 = vmatprep.subr.bf16.mxu0 0
        %730 = vmatpush1.bf16.msra.mxu0 0
        %731 = vmatprep.subr.bf16.mxu0 0
        %732 = vmatpush1.bf16.msra.mxu0 0
        %733 = vmatprep.subr.bf16.mxu0 0
        %734 = vmatpush1.bf16.msra.mxu0 0
        %735 = vmatprep.subr.bf16.mxu0 0
        %736 = vmatpush1.bf16.msra.mxu0 0
        %737 = vmatprep.subr.bf16.mxu0 0
        %738 = vmatpush1.bf16.msra.mxu0 0
        %739 = vmatprep.subr.bf16.mxu0 0
        %740 = vmatpush1.bf16.msra.mxu0 0
        %741 = vmatprep.subr.bf16.mxu0 0
        %742 = vmatpush1.bf16.msra.mxu0 0
        %743 = vmatprep.subr.bf16.mxu0 0
        %744 = vmatpush1.bf16.msra.mxu0 0
        %745 = vmatprep.mubr.bf16.mxu0 0
        %746 = vmatmul.mubr.bf16.gmra.mrb[0].mxu0 %v707
        %v747 = vpop.f32.mrb[0].mxu0
        %v748 = vadd.f32 0.0, %v747
        %v749 = vpop.f32.mrb[0].mxu0
        %v750 = vpop.f32.mrb[0].mxu0
        %v751 = vpop.f32.mrb[0].mxu0
        %752 = vdwg.mxu0
        %v753 = vpack.c.bf16 %v748, %v748
        %vm754 = vcmask 60416
        %755 = vst.msk [vmem:[%s434] sm:$0xf] %vm754, %v753
        %p756 = scmp.lt.s32.totalorder %s24, 1
        %s757 = scalar_select %p756, %s24, 1
        %p758 = scmp.lt.s32.totalorder %s25, 3
        %s759 = scalar_select %p758, %s25, 3
        %s760 = smul.addr %s757, 4
        %s761 = sadd.s32 %s759, %s760
        %s762 = smul.addr %s761, 4
        %s763 = scalar_lea.vmem %s4, %s762
        %s764 = sand.u32 %s174, 1
        %s765 = scalar_lea.sflag [#allocation5], %s764
        %s766 = sand.u32 %s174, 1
        %s767 = smul.addr %s766, 8
        %s768 = scalar_lea.vmem [#allocation4], %s767
        // Predicated region
        $region112: #{bert_layer_forward.2} parent=102 // pred_check
          %p769 = pneg %p156
        $region113: #{bert_layer_forward.2} parent=102 // pred_check_branch
          %771 = sbr.rel (%p769) target = $region115
        $region114: #{bert_layer_forward.2} parent=102 // pred_region
          _
        $region115: #{bert_layer_forward.2} parent=102 // pred_fallthru
          _
        // Predicated region
        $region116: #{bert_layer_forward.2} parent=102 // pred_check
          %p772 = pneg %p184
        $region117: #{bert_layer_forward.2} parent=102 // pred_check_branch
          %774 = sbr.rel (%p772) target = $region119
        $region118: #{bert_layer_forward.2} parent=102 // pred_region
          %s776 = ssub.s32 128, 128
          %777 = vsyncadd %s765, %s776
          %s778 = smul.addr %s24, 4
          %s779 = sadd.s32 %s25, %s778
          %s780 = smul.addr %s779, 128
          %s781 = scalar_lea.hbm %s5, %s780
          %s783 = sshll.u32 %s768, 4
          %s784 = int_to_ptr.vmem [resolvable:$true] %s783
          %786 = dma.vmem_to_hbm [thread:$0]  %s784, 128, %s781, %s765
        $region119: #{bert_layer_forward.2} parent=102 // pred_fallthru
          _
      $region103: #{bert_layer_forward.2} parent=5 // pred_fallthru
        _
      %p787 = scmp.le.s32.totalorder 2, %s15
      // Predicated region
      $region120: #{bert_layer_forward.2} parent=5 // pred_check
        %p788 = pneg %p787
      $region121: #{bert_layer_forward.2} parent=5 // pred_check_branch
        %790 = sbr.rel (%p788) target = $region123
      $region122: #{bert_layer_forward.2} parent=5 // pred_region
        %s791 = ssub.s32 %s15, 2
        // Predicated region
        $region124: #{bert_layer_forward.2} parent=122 // pred_check
          %p792 = pneg %p162
        $region125: #{bert_layer_forward.2} parent=122 // pred_check_branch
          %794 = sbr.rel (%p792) target = $region127
        $region126: #{bert_layer_forward.2} parent=122 // pred_region
          %p795 = scmp.lt.s32.totalorder %s26, 1
          %s796 = scalar_select %p795, %s26, 1
          %p797 = scmp.lt.s32.totalorder %s27, 3
          %s798 = scalar_select %p797, %s27, 3
          %s799 = smul.addr %s796, 4
          %s800 = sadd.s32 %s798, %s799
          %s801 = smul.addr %s800, 4
          %s802 = scalar_lea.vmem %s4, %s801
        $region127: #{bert_layer_forward.2} parent=122 // pred_fallthru
          _
        // Predicated region
        $region128: #{bert_layer_forward.2} parent=122 // pred_check
          %p803 = pneg %p190
        $region129: #{bert_layer_forward.2} parent=122 // pred_check_branch
          %805 = sbr.rel (%p803) target = $region131
        $region130: #{bert_layer_forward.2} parent=122 // pred_region
          %s806 = sand.u32 %s175, 1
          %s807 = scalar_lea.sflag [#allocation5], %s806
          %s808 = sand.u32 %s175, 1
          %s809 = smul.addr %s808, 8
          %s810 = scalar_lea.vmem [#allocation4], %s809
          %811 = dma.done %s807, 128
        $region131: #{bert_layer_forward.2} parent=122 // pred_fallthru
          _
      $region123: #{bert_layer_forward.2} parent=5 // pred_fallthru
        _
    $region6: #{bert_layer_forward.2} parent=1 // loop_footer
      %s19 = sadd.s32 1, %s15
    $region7: #{bert_layer_forward.2} parent=1 // loop_footer_branch
      %14 = sbr.rel target = $region3
    $region8: #{bert_layer_forward.2} parent=1 // loop_exit
      _
    %812 = vsyncpa [#allocation5], 1
    %s813 = scalar_lea.sflag [#allocation5], 1
    %814 = vsyncpa %s813, 1

</llo_original>
